<compile_context>
chip_gen: v6e
topology: v6e:2x2x1
jax: 0.10.0
libtpu: 0.0.40
codegen_flags: <defaults>
</compile_context>

<pallas_src>
import functools

import jax
import jax.numpy as jnp
from jax.experimental import pallas as pl
from jax.experimental.pallas import tpu as pltpu

C_IN = 4096  # fixed by the module definition: nn.Conv2d(4096, 1, 1)


def _conv1x1_sigmoid_kernel(x_ref, w_ref, b_ref, o_ref):
    # x_ref: (C, t)  channel-major columns of one image (VMEM)
    # w_ref: (1, C)  bf16 weight row, resident (VMEM)
    # b_ref: (1,)    f32 bias scalar (SMEM)
    # o_ref: (1, t)  lane-dense output tile (VMEM)
    x = x_ref[...]
    if x.dtype != jnp.bfloat16:
        # Single-pass bf16 MXU matmul with f32 accumulation keeps v7x DMA-bound;
        # a multi-pass f32 MXU lowering would make vmatpush the binding slot.
        x = x.astype(jnp.bfloat16)
    acc = jnp.dot(w_ref[...], x, preferred_element_type=jnp.float32)
    o_ref[...] = jax.nn.sigmoid(acc + b_ref[0]).astype(o_ref.dtype)


def _round_up(x, m):
    return ((x + m - 1) // m) * m


@functools.partial(jax.jit, static_argnames=("t_hw",))
def netD_forward(x_nchw, weight, bias, *, t_hw=1024):
    """Forward pass of _netD.

    x_nchw : (N, 4096, H, W) float32 (or bfloat16)
    weight : (1, 4096, 1, 1) float32   (PyTorch Conv2d weight layout)
    bias   : (1,) float32
    returns: (N*H*W,) float32          (== y.view(-1, 1).squeeze(1))
    """
    N, C, H, W = x_nchw.shape
    assert C == C_IN
    HW = H * W

    # Free reshape (contiguous): NCHW -> (N, C, HW). No transpose, no pad,
    # no extra HBM pass.
    x = x_nchw.reshape(N, C, HW)

    # Spatial tile (lane dim, multiple of 128). t=1024 -> 16 MiB f32 input block
    # (32 MiB double-buffered): biggest win on v7x, fine on v5e/v6e.
    t = min(t_hw, _round_up(HW, 128))
    # Expose >= 2 grid steps for single-image calls so both v7x TensorCores get work.
    if N == 1 and HW > 128 and HW <= t:
        t = _round_up(pl.cdiv(HW, 2), 128)

    num_spatial = pl.cdiv(HW, t)  # ragged last tile handled by Pallas (no jnp.pad)

    w_row = weight.reshape(1, C).astype(jnp.bfloat16)  # 8 KiB, resident weight row
    b_vec = bias.reshape(1).astype(jnp.float32)        # scalar bias -> SMEM

    itemsize = jnp.dtype(x.dtype).itemsize
    out = pl.pallas_call(
        _conv1x1_sigmoid_kernel,
        out_shape=jax.ShapeDtypeStruct((N, 1, HW), jnp.float32),
        grid=(N, num_spatial),
        in_specs=[
            # x: (N, C, HW); kernel sees (C, t); boundary tile is clipped by Pallas.
            pl.BlockSpec((pl.Squeezed(), C, t), lambda n, j: (n, 0, j)),
            # weight row, resident across the whole grid
            pl.BlockSpec((1, C), lambda n, j: (0, 0)),
            # bias scalar lives in SMEM (no VMEM tile / broadcast needed)
            pl.BlockSpec(memory_space=pltpu.MemorySpace.SMEM),
        ],
        # lane-dense output tile (last dim t is a multiple of 128)
        out_specs=pl.BlockSpec((pl.Squeezed(), 1, t), lambda n, j: (n, 0, j)),
        compiler_params=pltpu.CompilerParams(
            dimension_semantics=("parallel", "parallel"),
            vmem_limit_bytes=48 * 1024 * 1024,
        ),
        cost_estimate=pl.CostEstimate(
            flops=2 * N * C * HW,
            transcendentals=N * HW,
            bytes_accessed=N * C * HW * itemsize + 4 * N * HW + 2 * C,
        ),
    )(x, w_row, b_vec)

    # (N, 1, HW) -> flatten in (n, h, w) order, matching y.view(-1, 1).squeeze(1).
    return out.reshape(N * HW)


def init_params(key):
    """Deterministic param init mirroring weights_init (xavier_normal on conv weight)."""
    kw, kb = jax.random.split(key)
    fan_in, fan_out = C_IN * 1 * 1, 1 * 1 * 1
    std = (2.0 / (fan_in + fan_out)) ** 0.5
    weight = std * jax.random.normal(kw, (1, C_IN, 1, 1), dtype=jnp.float32)
    # PyTorch Conv2d default bias init: U(-1/sqrt(fan_in), 1/sqrt(fan_in))
    bound = 1.0 / (fan_in ** 0.5)
    bias = jax.random.uniform(kb, (1,), minval=-bound, maxval=bound, dtype=jnp.float32)
    return weight, bias


def _reference_forward(x_nchw, weight, bias):
    # Pure-JAX full-f32 reference of the PyTorch forward.
    y = jnp.einsum(
        "nchw,oc->nohw", x_nchw, weight.reshape(1, C_IN), precision="highest"
    ) + bias.reshape(1, 1, 1, 1)
    return jax.nn.sigmoid(y).reshape(-1)


if __name__ == "__main__":
    key = jax.random.PRNGKey(0)
    k_x, k_p = jax.random.split(key)

    # Small shapes consistent with the module: batch=2, channels=4096 (fixed), spatial=4x4.
    N, H, W = 2, 4, 4
    x = jax.random.normal(k_x, (N, C_IN, H, W), dtype=jnp.float32)

    weight, bias = init_params(k_p)

    out = jax.block_until_ready(netD_forward(x, weight, bias))
    ref = _reference_forward(x, weight, bias)

    assert out.shape == (N * H * W,)
    # Kernel matmul is single-pass bf16 (f32 accumulate); sigmoid compresses the
    # K=4096 bf16 rounding error well under 5e-3 absolute on [0, 1] outputs.
    err = float(jnp.max(jnp.abs(out - ref)))
    assert jnp.allclose(out, ref, atol=5e-3, rtol=0.0), f"max abs err {err}"

    print("KERNEL_OK")
</pallas_src>

<mosaic_0001>
module attributes {stable_mosaic.version = 11 : i64} {
  func.func @_conv1x1_sigmoid_kernel(%arg0: i32, %arg1: i32, %arg2: memref<1x4096x128xf32, #tpu.memory_space<vmem>>, %arg3: memref<1x4096xbf16, #tpu.memory_space<vmem>>, %arg4: memref<1xf32, #tpu.memory_space<smem>>, %arg5: memref<1x1x128xf32, #tpu.memory_space<vmem>>) attributes {dimension_semantics = [#tpu.dimension_semantics<parallel>, #tpu.dimension_semantics<parallel>], iteration_bounds = array<i64: 2, 1>, scalar_prefetch = 0 : i64, scratch_operands = 0 : i64, tpu.core_type = #tpu.core_type<tc>, window_params = [{transform_indices = @transform_0, window_bounds = array<i64: 1, 4096, 128>}, {pipeline_mode = #tpu.pipeline_mode<synchronous>, transform_indices = @transform_1, window_bounds = array<i64: 1, 4096>}, {transform_indices = @transform_2, window_bounds = array<i64: 1>}, {transform_indices = @transform_3, window_bounds = array<i64: 1, 1, 128>}]} {
    %c0 = arith.constant 0 : index
    %c0_0 = arith.constant 0 : index
    %c0_1 = arith.constant 0 : index
    %0 = vector.load %arg2[%c0, %c0_0, %c0_1] : memref<1x4096x128xf32, #tpu.memory_space<vmem>>, vector<1x4096x128xf32>
    %1 = vector.shape_cast %0 : vector<1x4096x128xf32> to vector<4096x128xf32>
    %2 = arith.truncf %1 : vector<4096x128xf32> to vector<4096x128xbf16>
    %c0_2 = arith.constant 0 : index
    %c0_3 = arith.constant 0 : index
    %3 = vector.load %arg3[%c0_2, %c0_3] : memref<1x4096xbf16, #tpu.memory_space<vmem>>, vector<1x4096xbf16>
    %cst = arith.constant dense<0.000000e+00> : vector<1x128xf32>
    %4 = tpu.matmul %3, %2, %cst {dimension_numbers = #tpu.dot_dimension_numbers<[1], [0], [0], [1], [0, 0, 1, 1], [], []>} : vector<1x4096xbf16>, vector<4096x128xbf16>, vector<1x128xf32> -> vector<1x128xf32>
    %c0_4 = arith.constant 0 : index
    %5 = memref.load %arg4[%c0_4] : memref<1xf32, #tpu.memory_space<smem>>
    %6 = vector.broadcast %5 : f32 to vector<1x128xf32>
    %7 = arith.addf %4, %6 : vector<1x128xf32>
    %8 = arith.negf %7 : vector<1x128xf32>
    %9 = math.exp %8 : vector<1x128xf32>
    %cst_5 = arith.constant 1.000000e+00 : f32
    %10 = vector.broadcast %cst_5 : f32 to vector<1x128xf32>
    %11 = arith.addf %10, %9 : vector<1x128xf32>
    %12 = arith.divf %10, %11 : vector<1x128xf32>
    %c0_6 = arith.constant 0 : index
    %c0_7 = arith.constant 0 : index
    %c0_8 = arith.constant 0 : index
    %13 = vector.load %arg5[%c0_6, %c0_7, %c0_8] : memref<1x1x128xf32, #tpu.memory_space<vmem>>, vector<1x1x128xf32>
    %14 = vector.shape_cast %13 : vector<1x1x128xf32> to vector<1x128xf32>
    %15 = vector.shape_cast %12 : vector<1x128xf32> to vector<1x1x128xf32>
    tpu.vector_store %arg5[%c0_6, %c0_7, %c0_8], %15 {strides = array<i32>} : memref<1x1x128xf32, #tpu.memory_space<vmem>>, vector<1x1x128xf32>,
    return
  }
  func.func @transform_0(%arg0: i32, %arg1: i32) -> (i32, i32, i32) {
    %c0_i32 = arith.constant 0 : i32
    %c0_i32_0 = arith.constant 0 : i32
    return %arg0, %c0_i32, %arg1 : i32, i32, i32
  }
  func.func @transform_1(%arg0: i32, %arg1: i32) -> (i32, i32) {
    %c0_i32 = arith.constant 0 : i32
    %c0_i32_0 = arith.constant 0 : i32
    %c0_i32_1 = arith.constant 0 : i32
    return %c0_i32, %c0_i32_0 : i32, i32
  }
  func.func @transform_2(%arg0: i32, %arg1: i32) -> i32 {
    %c0_i32 = arith.constant 0 : i32
    %c0_i32_0 = arith.constant 0 : i32
    return %c0_i32 : i32
  }
  func.func @transform_3(%arg0: i32, %arg1: i32) -> (i32, i32, i32) {
    %c0_i32 = arith.constant 0 : i32
    %c0_i32_0 = arith.constant 0 : i32
    return %arg0, %c0_i32, %arg1 : i32, i32, i32
  }
}

</mosaic_0001>

<llo_original>
// kernel: netD_forward.1
$region0: #{netD_forward.1}
  #allocation0 [shape = 'u32[]', space=smem, size = 0x4, offset = 0x4, fixed_abs, tag = 'smem constant byte address 0x4 - core index']
  #allocation1 [shape = 'u32[144,128]{1,0:T(1,128)}', space=vmem, size = 0x12000, scoped, tag = 'internal scratch']
  #allocation2 [shape = 'f32[1]{0:T(128)S(6)}', space=smem, size = 0x200, scoped, tag = 'scoped memory for netD_forward.1']
  %s0 = inlined_call_operand.vmem [shape: f32[2,4096,16], index: 0, kind: input, shape index: {}]
  %s1 = inlined_call_operand.vmem [shape: bf16[1,4096], index: 1, kind: input, shape index: {}]
  %s2 = inlined_call_operand.<no memory space> [shape: f32[1], index: 2, kind: input, shape index: {}]
  %s3 = inlined_call_operand.vmem [shape: f32[2,1,16], index: 3, kind: output, shape index: {}]
  %s4 = sld [smem:[#allocation0]]
  $region45: #{netD_forward.1} parent=0
    _
  %s6 = ssub.s32 1, %s4
  %s7 = scalar_select 0, %s6, %s4
  %8 = sst [smem:[#allocation2]] %s2
  loop: start=0, step=1, limit=4
  $region2: #{netD_forward.1} parent=0 // loop_pre_header
    _
  $region3: #{netD_forward.1} parent=0 // loop_header
    %s10 = sphi 0, %s14
    %p11 = scmp.ge.s32.totalorder %s10, 4
    %s17 = sphi 0, %s29
    %s18 = sphi 0, %s25
    %s19 = sphi 0, %s17
    %s20 = sphi 0, %s18
    %s21 = sphi 0, %s19
    %s22 = sphi 0, %s20
    %s34 = sphi 0, %s36
    %s37 = sphi 0, %s34
    %s38 = sphi 0, %s37
    %s54 = sphi 0, %s38
    %s58 = sphi 0, %s58
    %s60 = sphi 0, %s58
    %s61 = sphi 0, %s60
    %s75 = sphi 0, %s61
    %s79 = sphi 0, %s79
    %s81 = sphi 0, %s79
    %s82 = sphi 0, %s81
    %s96 = sphi 0, %s82
    %s104 = sphi 0, %s106
    %s107 = sphi 0, %s104
    %s108 = sphi 0, %s107
    %s124 = sphi 0, %s108
  $region4: #{netD_forward.1} parent=0 // loop_header_branch
    %13 = sbr.rel (%p11) target = $region8
  $region5: #{netD_forward.1} parent=0 // loop_body
    %s15 = ssub.s32 %s10, 1
    %s16 = ssub.s32 %s10, 2
    %s23 = sadd.s32 1, %s18
    %p24 = scmp.ge.s32.totalorder %s23, 1
    %s25 = scalar_select %p24, 0, %s23
    %s26 = sadd.s32 1, %s17
    %s27 = scalar_select %p24, %s26, %s17
    %p28 = scmp.ge.s32.totalorder %s27, 2
    %s29 = scalar_select %p28, 0, %s27
    %s30 = ssub.s32 %s17, %s29
    %s31 = ssub.s32 %s18, %s25
    %s32 = sor.u32 %s30, %s31
    %p33 = scmp.eq.s32.totalorder %s32, 0
    %s35 = sadd.s32 %s34, 1
    %s36 = scalar_select %p33, %s34, %s35
    %p39 = pneg %p33
    %p40 = scmp.eq.s32.totalorder %s10, 1
    %p41 = por %p39, %p40
    %p42 = scmp.ne.s32.totalorder %s34, %s37
    %p43 = scmp.eq.s32.totalorder %s10, 0
    %p44 = por %p42, %p43
    %p45 = scmp.ne.s32.totalorder %s34, %s37
    %p46 = scmp.eq.s32.totalorder %s15, 1
    %p47 = por %p45, %p46
    %p48 = scmp.ne.s32.totalorder %s37, %s38
    %p49 = scmp.eq.s32.totalorder %s15, 0
    %p50 = por %p48, %p49
    %p51 = scmp.ne.s32.totalorder %s37, %s38
    %p52 = scmp.eq.s32.totalorder %s16, 1
    %p53 = por %p51, %p52
    %p55 = scmp.ne.s32.totalorder %s38, %s54
    %p56 = scmp.eq.s32.totalorder %s16, 0
    %p57 = por %p55, %p56
    %s59 = sadd.s32 %s58, 1
    %p62 = scmp.eq.s32.totalorder %s10, 1
    %p63 = scmp.ne.s32.totalorder %s58, %s60
    %p64 = scmp.eq.s32.totalorder %s10, 0
    %p65 = por %p63, %p64
    %p66 = scmp.ne.s32.totalorder %s58, %s60
    %p67 = scmp.eq.s32.totalorder %s15, 1
    %p68 = por %p66, %p67
    %p69 = scmp.ne.s32.totalorder %s60, %s61
    %p70 = scmp.eq.s32.totalorder %s15, 0
    %p71 = por %p69, %p70
    %p72 = scmp.ne.s32.totalorder %s60, %s61
    %p73 = scmp.eq.s32.totalorder %s16, 1
    %p74 = por %p72, %p73
    %p76 = scmp.ne.s32.totalorder %s61, %s75
    %p77 = scmp.eq.s32.totalorder %s16, 0
    %p78 = por %p76, %p77
    %s80 = sadd.s32 %s79, 1
    %p83 = scmp.eq.s32.totalorder %s10, 1
    %p84 = scmp.ne.s32.totalorder %s79, %s81
    %p85 = scmp.eq.s32.totalorder %s10, 0
    %p86 = por %p84, %p85
    %p87 = scmp.ne.s32.totalorder %s79, %s81
    %p88 = scmp.eq.s32.totalorder %s15, 1
    %p89 = por %p87, %p88
    %p90 = scmp.ne.s32.totalorder %s81, %s82
    %p91 = scmp.eq.s32.totalorder %s15, 0
    %p92 = por %p90, %p91
    %p93 = scmp.ne.s32.totalorder %s81, %s82
    %p94 = scmp.eq.s32.totalorder %s16, 1
    %p95 = por %p93, %p94
    %p97 = scmp.ne.s32.totalorder %s82, %s96
    %p98 = scmp.eq.s32.totalorder %s16, 0
    %p99 = por %p97, %p98
    %s100 = ssub.s32 %s17, %s29
    %s101 = ssub.s32 %s18, %s25
    %s102 = sor.u32 %s100, %s101
    %p103 = scmp.eq.s32.totalorder %s102, 0
    %s105 = sadd.s32 %s104, 1
    %s106 = scalar_select %p103, %s104, %s105
    %p109 = pneg %p103
    %p110 = scmp.eq.s32.totalorder %s10, 1
    %p111 = por %p109, %p110
    %p112 = scmp.ne.s32.totalorder %s104, %s107
    %p113 = scmp.eq.s32.totalorder %s10, 0
    %p114 = por %p112, %p113
    %p115 = scmp.ne.s32.totalorder %s104, %s107
    %p116 = scmp.eq.s32.totalorder %s15, 1
    %p117 = por %p115, %p116
    %p118 = scmp.ne.s32.totalorder %s107, %s108
    %p119 = scmp.eq.s32.totalorder %s15, 0
    %p120 = por %p118, %p119
    %p121 = scmp.ne.s32.totalorder %s107, %s108
    %p122 = scmp.eq.s32.totalorder %s16, 1
    %p123 = por %p121, %p122
    %p125 = scmp.ne.s32.totalorder %s108, %s124
    %p126 = scmp.eq.s32.totalorder %s16, 0
    %p127 = por %p125, %p126
    %p128 = scmp.le.s32.totalorder 1, %s10
    %p129 = scmp.lt.s32.totalorder %s10, 3
    %p130 = pnand %p128, %p129
    %p131 = pneg %p130
    // Predicated region
    $region9: #{netD_forward.1} parent=5 // pred_check
      _
    $region10: #{netD_forward.1} parent=5 // pred_check_branch
      %133 = sbr.rel (%p130) target = $region12
    $region11: #{netD_forward.1} parent=5 // pred_region
      %s134 = ssub.s32 %s10, 1
      // Predicated region
      $region13: #{netD_forward.1} parent=11 // pred_check
        %p135 = pneg %p71
      $region14: #{netD_forward.1} parent=11 // pred_check_branch
        %137 = sbr.rel (%p135) target = $region16
      $region15: #{netD_forward.1} parent=11 // pred_region
        _
      $region16: #{netD_forward.1} parent=11 // pred_fallthru
        _
      // Predicated region
      $region17: #{netD_forward.1} parent=11 // pred_check
        %p138 = pneg %p92
      $region18: #{netD_forward.1} parent=11 // pred_check_branch
        %140 = sbr.rel (%p138) target = $region20
      $region19: #{netD_forward.1} parent=11 // pred_region
        _
      $region20: #{netD_forward.1} parent=11 // pred_fallthru
        _
    $region12: #{netD_forward.1} parent=5 // pred_fallthru
      _
    %p141 = scmp.lt.s32.totalorder %s10, 2
    // Predicated region
    $region21: #{netD_forward.1} parent=5 // pred_check
      %p142 = pneg %p141
    $region22: #{netD_forward.1} parent=5 // pred_check_branch
      %144 = sbr.rel (%p142) target = $region24
    $region23: #{netD_forward.1} parent=5 // pred_region
      // Predicated region
      $region25: #{netD_forward.1} parent=23 // pred_check
        %p145 = pneg %p44
      $region26: #{netD_forward.1} parent=23 // pred_check_branch
        %147 = sbr.rel (%p145) target = $region28
      $region27: #{netD_forward.1} parent=23 // pred_region
        %p148 = scmp.lt.s32.totalorder %s17, 1
        %s149 = scalar_select %p148, %s17, 1
        %p150 = scmp.lt.s32.totalorder %s18, 0
        %s151 = scalar_select %p150, %s18, 0
        %s152 = smul.addr %s149, 512
        %s153 = sadd.s32 %s151, %s152
        %s154 = smul.addr %s153, 8
        %s155 = scalar_lea.vmem %s0, %s154
      $region28: #{netD_forward.1} parent=23 // pred_fallthru
        _
    $region24: #{netD_forward.1} parent=5 // pred_fallthru
      _
    %p156 = scmp.le.s32.totalorder 1, %s10
    %p157 = scmp.lt.s32.totalorder %s10, 3
    %p158 = pnand %p156, %p157
    %p159 = pneg %p158
    // Predicated region
    $region29: #{netD_forward.1} parent=5 // pred_check
      _
    $region30: #{netD_forward.1} parent=5 // pred_check_branch
      %161 = sbr.rel (%p158) target = $region32
    $region31: #{netD_forward.1} parent=5 // pred_region
      %s162 = ssub.s32 %s10, 1
      %p163 = scmp.lt.s32.totalorder %s19, 1
      %s164 = scalar_select %p163, %s19, 1
      %p165 = scmp.lt.s32.totalorder %s20, 0
      %s166 = scalar_select %p165, %s20, 0
      %s167 = smul.addr %s164, 512
      %s168 = sadd.s32 %s166, %s167
      %s169 = smul.addr %s168, 8
      %s170 = scalar_lea.vmem %s0, %s169
      %p171 = pneg %p50
      %p172 = pneg %p47
      %p173 = pneg %p71
      %p174 = pneg %p68
      %p175 = pneg %p92
      %p176 = pneg %p89
      %p177 = pneg %p120
      %p178 = pneg %p117
      %p179 = scmp.lt.s32.totalorder %s19, 1
      %s180 = scalar_select %p179, %s19, 1
      %p181 = scmp.lt.s32.totalorder %s20, 0
      %s182 = scalar_select %p181, %s20, 0
      %s183 = sadd.s32 %s182, %s180
      %s184 = scalar_lea.vmem %s3, %s183
      %p185 = scmp.lt.s32.totalorder %s19, 1
      %s186 = scalar_select %p185, %s19, 1
      %p187 = scmp.lt.s32.totalorder %s20, 0
      %s188 = scalar_select %p187, %s20, 0
      %s189 = smul.addr %s186, 512
      %s190 = sadd.s32 %s188, %s189
      %s191 = smul.addr %s190, 8
      %s192 = scalar_lea.vmem %s0, %s191
      %p193 = scmp.lt.s32.totalorder %s19, 1
      %s194 = scalar_select %p193, %s19, 1
      %p195 = scmp.lt.s32.totalorder %s20, 0
      %s196 = scalar_select %p195, %s20, 0
      %s197 = sadd.s32 %s196, %s194
      %s198 = scalar_lea.vmem %s3, %s197
      %v200 = vld [vmem:[%s192] sm:$0xff]
      %v201 = vld [vmem:[%s192 + $0x8] sm:$0xff]
      %v202 = vld [vmem:[%s192 + $0x10] sm:$0xff]
      %v203 = vld [vmem:[%s192 + $0x18] sm:$0xff]
      %v204 = vld [vmem:[%s192 + $0x20] sm:$0xff]
      %v205 = vld [vmem:[%s192 + $0x28] sm:$0xff]
      %v206 = vld [vmem:[%s192 + $0x30] sm:$0xff]
      %v207 = vld [vmem:[%s192 + $0x38] sm:$0xff]
      %v208 = vld [vmem:[%s192 + $0x40] sm:$0xff]
      %v209 = vld [vmem:[%s192 + $0x48] sm:$0xff]
      %v210 = vld [vmem:[%s192 + $0x50] sm:$0xff]
      %v211 = vld [vmem:[%s192 + $0x58] sm:$0xff]
      %v212 = vld [vmem:[%s192 + $0x60] sm:$0xff]
      %v213 = vld [vmem:[%s192 + $0x68] sm:$0xff]
      %v214 = vld [vmem:[%s192 + $0x70] sm:$0xff]
      %v215 = vld [vmem:[%s192 + $0x78] sm:$0xff]
      %v216 = vld [vmem:[%s192 + $0x80] sm:$0xff]
      %v217 = vld [vmem:[%s192 + $0x88] sm:$0xff]
      %v218 = vld [vmem:[%s192 + $0x90] sm:$0xff]
      %v219 = vld [vmem:[%s192 + $0x98] sm:$0xff]
      %v220 = vld [vmem:[%s192 + $0xa0] sm:$0xff]
      %v221 = vld [vmem:[%s192 + $0xa8] sm:$0xff]
      %v222 = vld [vmem:[%s192 + $0xb0] sm:$0xff]
      %v223 = vld [vmem:[%s192 + $0xb8] sm:$0xff]
      %v224 = vld [vmem:[%s192 + $0xc0] sm:$0xff]
      %v225 = vld [vmem:[%s192 + $0xc8] sm:$0xff]
      %v226 = vld [vmem:[%s192 + $0xd0] sm:$0xff]
      %v227 = vld [vmem:[%s192 + $0xd8] sm:$0xff]
      %v228 = vld [vmem:[%s192 + $0xe0] sm:$0xff]
      %v229 = vld [vmem:[%s192 + $0xe8] sm:$0xff]
      %v230 = vld [vmem:[%s192 + $0xf0] sm:$0xff]
      %v231 = vld [vmem:[%s192 + $0xf8] sm:$0xff]
      %v232 = vld [vmem:[%s192 + $0x100] sm:$0xff]
      %v233 = vld [vmem:[%s192 + $0x108] sm:$0xff]
      %v234 = vld [vmem:[%s192 + $0x110] sm:$0xff]
      %v235 = vld [vmem:[%s192 + $0x118] sm:$0xff]
      %v236 = vld [vmem:[%s192 + $0x120] sm:$0xff]
      %v237 = vld [vmem:[%s192 + $0x128] sm:$0xff]
      %v238 = vld [vmem:[%s192 + $0x130] sm:$0xff]
      %v239 = vld [vmem:[%s192 + $0x138] sm:$0xff]
      %v240 = vld [vmem:[%s192 + $0x140] sm:$0xff]
      %v241 = vld [vmem:[%s192 + $0x148] sm:$0xff]
      %v242 = vld [vmem:[%s192 + $0x150] sm:$0xff]
      %v243 = vld [vmem:[%s192 + $0x158] sm:$0xff]
      %v244 = vld [vmem:[%s192 + $0x160] sm:$0xff]
      %v245 = vld [vmem:[%s192 + $0x168] sm:$0xff]
      %v246 = vld [vmem:[%s192 + $0x170] sm:$0xff]
      %v247 = vld [vmem:[%s192 + $0x178] sm:$0xff]
      %v248 = vld [vmem:[%s192 + $0x180] sm:$0xff]
      %v249 = vld [vmem:[%s192 + $0x188] sm:$0xff]
      %v250 = vld [vmem:[%s192 + $0x190] sm:$0xff]
      %v251 = vld [vmem:[%s192 + $0x198] sm:$0xff]
      %v252 = vld [vmem:[%s192 + $0x1a0] sm:$0xff]
      %v253 = vld [vmem:[%s192 + $0x1a8] sm:$0xff]
      %v254 = vld [vmem:[%s192 + $0x1b0] sm:$0xff]
      %v255 = vld [vmem:[%s192 + $0x1b8] sm:$0xff]
      %v256 = vld [vmem:[%s192 + $0x1c0] sm:$0xff]
      %v257 = vld [vmem:[%s192 + $0x1c8] sm:$0xff]
      %v258 = vld [vmem:[%s192 + $0x1d0] sm:$0xff]
      %v259 = vld [vmem:[%s192 + $0x1d8] sm:$0xff]
      %v260 = vld [vmem:[%s192 + $0x1e0] sm:$0xff]
      %v261 = vld [vmem:[%s192 + $0x1e8] sm:$0xff]
      %v262 = vld [vmem:[%s192 + $0x1f0] sm:$0xff]
      %v263 = vld [vmem:[%s192 + $0x1f8] sm:$0xff]
      %v264 = vld [vmem:[%s192 + $0x200] sm:$0xff]
      %v265 = vld [vmem:[%s192 + $0x208] sm:$0xff]
      %v266 = vld [vmem:[%s192 + $0x210] sm:$0xff]
      %v267 = vld [vmem:[%s192 + $0x218] sm:$0xff]
      %v268 = vld [vmem:[%s192 + $0x220] sm:$0xff]
      %v269 = vld [vmem:[%s192 + $0x228] sm:$0xff]
      %v270 = vld [vmem:[%s192 + $0x230] sm:$0xff]
      %v271 = vld [vmem:[%s192 + $0x238] sm:$0xff]
      %v272 = vld [vmem:[%s192 + $0x240] sm:$0xff]
      %v273 = vld [vmem:[%s192 + $0x248] sm:$0xff]
      %v274 = vld [vmem:[%s192 + $0x250] sm:$0xff]
      %v275 = vld [vmem:[%s192 + $0x258] sm:$0xff]
      %v276 = vld [vmem:[%s192 + $0x260] sm:$0xff]
      %v277 = vld [vmem:[%s192 + $0x268] sm:$0xff]
      %v278 = vld [vmem:[%s192 + $0x270] sm:$0xff]
      %v279 = vld [vmem:[%s192 + $0x278] sm:$0xff]
      %v280 = vld [vmem:[%s192 + $0x280] sm:$0xff]
      %v281 = vld [vmem:[%s192 + $0x288] sm:$0xff]
      %v282 = vld [vmem:[%s192 + $0x290] sm:$0xff]
      %v283 = vld [vmem:[%s192 + $0x298] sm:$0xff]
      %v284 = vld [vmem:[%s192 + $0x2a0] sm:$0xff]
      %v285 = vld [vmem:[%s192 + $0x2a8] sm:$0xff]
      %v286 = vld [vmem:[%s192 + $0x2b0] sm:$0xff]
      %v287 = vld [vmem:[%s192 + $0x2b8] sm:$0xff]
      %v288 = vld [vmem:[%s192 + $0x2c0] sm:$0xff]
      %v289 = vld [vmem:[%s192 + $0x2c8] sm:$0xff]
      %v290 = vld [vmem:[%s192 + $0x2d0] sm:$0xff]
      %v291 = vld [vmem:[%s192 + $0x2d8] sm:$0xff]
      %v292 = vld [vmem:[%s192 + $0x2e0] sm:$0xff]
      %v293 = vld [vmem:[%s192 + $0x2e8] sm:$0xff]
      %v294 = vld [vmem:[%s192 + $0x2f0] sm:$0xff]
      %v295 = vld [vmem:[%s192 + $0x2f8] sm:$0xff]
      %v296 = vld [vmem:[%s192 + $0x300] sm:$0xff]
      %v297 = vld [vmem:[%s192 + $0x308] sm:$0xff]
      %v298 = vld [vmem:[%s192 + $0x310] sm:$0xff]
      %v299 = vld [vmem:[%s192 + $0x318] sm:$0xff]
      %v300 = vld [vmem:[%s192 + $0x320] sm:$0xff]
      %v301 = vld [vmem:[%s192 + $0x328] sm:$0xff]
      %v302 = vld [vmem:[%s192 + $0x330] sm:$0xff]
      %v303 = vld [vmem:[%s192 + $0x338] sm:$0xff]
      %v304 = vld [vmem:[%s192 + $0x340] sm:$0xff]
      %v305 = vld [vmem:[%s192 + $0x348] sm:$0xff]
      %v306 = vld [vmem:[%s192 + $0x350] sm:$0xff]
      %v307 = vld [vmem:[%s192 + $0x358] sm:$0xff]
      %v308 = vld [vmem:[%s192 + $0x360] sm:$0xff]
      %v309 = vld [vmem:[%s192 + $0x368] sm:$0xff]
      %v310 = vld [vmem:[%s192 + $0x370] sm:$0xff]
      %v311 = vld [vmem:[%s192 + $0x378] sm:$0xff]
      %v312 = vld [vmem:[%s192 + $0x380] sm:$0xff]
      %v313 = vld [vmem:[%s192 + $0x388] sm:$0xff]
      %v314 = vld [vmem:[%s192 + $0x390] sm:$0xff]
      %v315 = vld [vmem:[%s192 + $0x398] sm:$0xff]
      %v316 = vld [vmem:[%s192 + $0x3a0] sm:$0xff]
      %v317 = vld [vmem:[%s192 + $0x3a8] sm:$0xff]
      %v318 = vld [vmem:[%s192 + $0x3b0] sm:$0xff]
      %v319 = vld [vmem:[%s192 + $0x3b8] sm:$0xff]
      %v320 = vld [vmem:[%s192 + $0x3c0] sm:$0xff]
      %v321 = vld [vmem:[%s192 + $0x3c8] sm:$0xff]
      %v322 = vld [vmem:[%s192 + $0x3d0] sm:$0xff]
      %v323 = vld [vmem:[%s192 + $0x3d8] sm:$0xff]
      %v324 = vld [vmem:[%s192 + $0x3e0] sm:$0xff]
      %v325 = vld [vmem:[%s192 + $0x3e8] sm:$0xff]
      %v326 = vld [vmem:[%s192 + $0x3f0] sm:$0xff]
      %v327 = vld [vmem:[%s192 + $0x3f8] sm:$0xff]
      %v328 = vld [vmem:[%s192 + $0x400] sm:$0xff]
      %v329 = vld [vmem:[%s192 + $0x408] sm:$0xff]
      %v330 = vld [vmem:[%s192 + $0x410] sm:$0xff]
      %v331 = vld [vmem:[%s192 + $0x418] sm:$0xff]
      %v332 = vld [vmem:[%s192 + $0x420] sm:$0xff]
      %v333 = vld [vmem:[%s192 + $0x428] sm:$0xff]
      %v334 = vld [vmem:[%s192 + $0x430] sm:$0xff]
      %v335 = vld [vmem:[%s192 + $0x438] sm:$0xff]
      %v336 = vld [vmem:[%s192 + $0x440] sm:$0xff]
      %v337 = vld [vmem:[%s192 + $0x448] sm:$0xff]
      %v338 = vld [vmem:[%s192 + $0x450] sm:$0xff]
      %v339 = vld [vmem:[%s192 + $0x458] sm:$0xff]
      %v340 = vld [vmem:[%s192 + $0x460] sm:$0xff]
      %v341 = vld [vmem:[%s192 + $0x468] sm:$0xff]
      %v342 = vld [vmem:[%s192 + $0x470] sm:$0xff]
      %v343 = vld [vmem:[%s192 + $0x478] sm:$0xff]
      %v344 = vld [vmem:[%s192 + $0x480] sm:$0xff]
      %v345 = vld [vmem:[%s192 + $0x488] sm:$0xff]
      %v346 = vld [vmem:[%s192 + $0x490] sm:$0xff]
      %v347 = vld [vmem:[%s192 + $0x498] sm:$0xff]
      %v348 = vld [vmem:[%s192 + $0x4a0] sm:$0xff]
      %v349 = vld [vmem:[%s192 + $0x4a8] sm:$0xff]
      %v350 = vld [vmem:[%s192 + $0x4b0] sm:$0xff]
      %v351 = vld [vmem:[%s192 + $0x4b8] sm:$0xff]
      %v352 = vld [vmem:[%s192 + $0x4c0] sm:$0xff]
      %v353 = vld [vmem:[%s192 + $0x4c8] sm:$0xff]
      %v354 = vld [vmem:[%s192 + $0x4d0] sm:$0xff]
      %v355 = vld [vmem:[%s192 + $0x4d8] sm:$0xff]
      %v356 = vld [vmem:[%s192 + $0x4e0] sm:$0xff]
      %v357 = vld [vmem:[%s192 + $0x4e8] sm:$0xff]
      %v358 = vld [vmem:[%s192 + $0x4f0] sm:$0xff]
      %v359 = vld [vmem:[%s192 + $0x4f8] sm:$0xff]
      %v360 = vld [vmem:[%s192 + $0x500] sm:$0xff]
      %v361 = vld [vmem:[%s192 + $0x508] sm:$0xff]
      %v362 = vld [vmem:[%s192 + $0x510] sm:$0xff]
      %v363 = vld [vmem:[%s192 + $0x518] sm:$0xff]
      %v364 = vld [vmem:[%s192 + $0x520] sm:$0xff]
      %v365 = vld [vmem:[%s192 + $0x528] sm:$0xff]
      %v366 = vld [vmem:[%s192 + $0x530] sm:$0xff]
      %v367 = vld [vmem:[%s192 + $0x538] sm:$0xff]
      %v368 = vld [vmem:[%s192 + $0x540] sm:$0xff]
      %v369 = vld [vmem:[%s192 + $0x548] sm:$0xff]
      %v370 = vld [vmem:[%s192 + $0x550] sm:$0xff]
      %v371 = vld [vmem:[%s192 + $0x558] sm:$0xff]
      %v372 = vld [vmem:[%s192 + $0x560] sm:$0xff]
      %v373 = vld [vmem:[%s192 + $0x568] sm:$0xff]
      %v374 = vld [vmem:[%s192 + $0x570] sm:$0xff]
      %v375 = vld [vmem:[%s192 + $0x578] sm:$0xff]
      %v376 = vld [vmem:[%s192 + $0x580] sm:$0xff]
      %v377 = vld [vmem:[%s192 + $0x588] sm:$0xff]
      %v378 = vld [vmem:[%s192 + $0x590] sm:$0xff]
      %v379 = vld [vmem:[%s192 + $0x598] sm:$0xff]
      %v380 = vld [vmem:[%s192 + $0x5a0] sm:$0xff]
      %v381 = vld [vmem:[%s192 + $0x5a8] sm:$0xff]
      %v382 = vld [vmem:[%s192 + $0x5b0] sm:$0xff]
      %v383 = vld [vmem:[%s192 + $0x5b8] sm:$0xff]
      %v384 = vld [vmem:[%s192 + $0x5c0] sm:$0xff]
      %v385 = vld [vmem:[%s192 + $0x5c8] sm:$0xff]
      %v386 = vld [vmem:[%s192 + $0x5d0] sm:$0xff]
      %v387 = vld [vmem:[%s192 + $0x5d8] sm:$0xff]
      %v388 = vld [vmem:[%s192 + $0x5e0] sm:$0xff]
      %v389 = vld [vmem:[%s192 + $0x5e8] sm:$0xff]
      %v390 = vld [vmem:[%s192 + $0x5f0] sm:$0xff]
      %v391 = vld [vmem:[%s192 + $0x5f8] sm:$0xff]
      %v392 = vld [vmem:[%s192 + $0x600] sm:$0xff]
      %v393 = vld [vmem:[%s192 + $0x608] sm:$0xff]
      %v394 = vld [vmem:[%s192 + $0x610] sm:$0xff]
      %v395 = vld [vmem:[%s192 + $0x618] sm:$0xff]
      %v396 = vld [vmem:[%s192 + $0x620] sm:$0xff]
      %v397 = vld [vmem:[%s192 + $0x628] sm:$0xff]
      %v398 = vld [vmem:[%s192 + $0x630] sm:$0xff]
      %v399 = vld [vmem:[%s192 + $0x638] sm:$0xff]
      %v400 = vld [vmem:[%s192 + $0x640] sm:$0xff]
      %v401 = vld [vmem:[%s192 + $0x648] sm:$0xff]
      %v402 = vld [vmem:[%s192 + $0x650] sm:$0xff]
      %v403 = vld [vmem:[%s192 + $0x658] sm:$0xff]
      %v404 = vld [vmem:[%s192 + $0x660] sm:$0xff]
      %v405 = vld [vmem:[%s192 + $0x668] sm:$0xff]
      %v406 = vld [vmem:[%s192 + $0x670] sm:$0xff]
      %v407 = vld [vmem:[%s192 + $0x678] sm:$0xff]
      %v408 = vld [vmem:[%s192 + $0x680] sm:$0xff]
      %v409 = vld [vmem:[%s192 + $0x688] sm:$0xff]
      %v410 = vld [vmem:[%s192 + $0x690] sm:$0xff]
      %v411 = vld [vmem:[%s192 + $0x698] sm:$0xff]
      %v412 = vld [vmem:[%s192 + $0x6a0] sm:$0xff]
      %v413 = vld [vmem:[%s192 + $0x6a8] sm:$0xff]
      %v414 = vld [vmem:[%s192 + $0x6b0] sm:$0xff]
      %v415 = vld [vmem:[%s192 + $0x6b8] sm:$0xff]
      %v416 = vld [vmem:[%s192 + $0x6c0] sm:$0xff]
      %v417 = vld [vmem:[%s192 + $0x6c8] sm:$0xff]
      %v418 = vld [vmem:[%s192 + $0x6d0] sm:$0xff]
      %v419 = vld [vmem:[%s192 + $0x6d8] sm:$0xff]
      %v420 = vld [vmem:[%s192 + $0x6e0] sm:$0xff]
      %v421 = vld [vmem:[%s192 + $0x6e8] sm:$0xff]
      %v422 = vld [vmem:[%s192 + $0x6f0] sm:$0xff]
      %v423 = vld [vmem:[%s192 + $0x6f8] sm:$0xff]
      %v424 = vld [vmem:[%s192 + $0x700] sm:$0xff]
      %v425 = vld [vmem:[%s192 + $0x708] sm:$0xff]
      %v426 = vld [vmem:[%s192 + $0x710] sm:$0xff]
      %v427 = vld [vmem:[%s192 + $0x718] sm:$0xff]
      %v428 = vld [vmem:[%s192 + $0x720] sm:$0xff]
      %v429 = vld [vmem:[%s192 + $0x728] sm:$0xff]
      %v430 = vld [vmem:[%s192 + $0x730] sm:$0xff]
      %v431 = vld [vmem:[%s192 + $0x738] sm:$0xff]
      %v432 = vld [vmem:[%s192 + $0x740] sm:$0xff]
      %v433 = vld [vmem:[%s192 + $0x748] sm:$0xff]
      %v434 = vld [vmem:[%s192 + $0x750] sm:$0xff]
      %v435 = vld [vmem:[%s192 + $0x758] sm:$0xff]
      %v436 = vld [vmem:[%s192 + $0x760] sm:$0xff]
      %v437 = vld [vmem:[%s192 + $0x768] sm:$0xff]
      %v438 = vld [vmem:[%s192 + $0x770] sm:$0xff]
      %v439 = vld [vmem:[%s192 + $0x778] sm:$0xff]
      %v440 = vld [vmem:[%s192 + $0x780] sm:$0xff]
      %v441 = vld [vmem:[%s192 + $0x788] sm:$0xff]
      %v442 = vld [vmem:[%s192 + $0x790] sm:$0xff]
      %v443 = vld [vmem:[%s192 + $0x798] sm:$0xff]
      %v444 = vld [vmem:[%s192 + $0x7a0] sm:$0xff]
      %v445 = vld [vmem:[%s192 + $0x7a8] sm:$0xff]
      %v446 = vld [vmem:[%s192 + $0x7b0] sm:$0xff]
      %v447 = vld [vmem:[%s192 + $0x7b8] sm:$0xff]
      %v448 = vld [vmem:[%s192 + $0x7c0] sm:$0xff]
      %v449 = vld [vmem:[%s192 + $0x7c8] sm:$0xff]
      %v450 = vld [vmem:[%s192 + $0x7d0] sm:$0xff]
      %v451 = vld [vmem:[%s192 + $0x7d8] sm:$0xff]
      %v452 = vld [vmem:[%s192 + $0x7e0] sm:$0xff]
      %v453 = vld [vmem:[%s192 + $0x7e8] sm:$0xff]
      %v454 = vld [vmem:[%s192 + $0x7f0] sm:$0xff]
      %v455 = vld [vmem:[%s192 + $0x7f8] sm:$0xff]
      %v456 = vld [vmem:[%s192 + $0x800] sm:$0xff]
      %v457 = vld [vmem:[%s192 + $0x808] sm:$0xff]
      %v458 = vld [vmem:[%s192 + $0x810] sm:$0xff]
      %v459 = vld [vmem:[%s192 + $0x818] sm:$0xff]
      %v460 = vld [vmem:[%s192 + $0x820] sm:$0xff]
      %v461 = vld [vmem:[%s192 + $0x828] sm:$0xff]
      %v462 = vld [vmem:[%s192 + $0x830] sm:$0xff]
      %v463 = vld [vmem:[%s192 + $0x838] sm:$0xff]
      %v464 = vld [vmem:[%s192 + $0x840] sm:$0xff]
      %v465 = vld [vmem:[%s192 + $0x848] sm:$0xff]
      %v466 = vld [vmem:[%s192 + $0x850] sm:$0xff]
      %v467 = vld [vmem:[%s192 + $0x858] sm:$0xff]
      %v468 = vld [vmem:[%s192 + $0x860] sm:$0xff]
      %v469 = vld [vmem:[%s192 + $0x868] sm:$0xff]
      %v470 = vld [vmem:[%s192 + $0x870] sm:$0xff]
      %v471 = vld [vmem:[%s192 + $0x878] sm:$0xff]
      %v472 = vld [vmem:[%s192 + $0x880] sm:$0xff]
      %v473 = vld [vmem:[%s192 + $0x888] sm:$0xff]
      %v474 = vld [vmem:[%s192 + $0x890] sm:$0xff]
      %v475 = vld [vmem:[%s192 + $0x898] sm:$0xff]
      %v476 = vld [vmem:[%s192 + $0x8a0] sm:$0xff]
      %v477 = vld [vmem:[%s192 + $0x8a8] sm:$0xff]
      %v478 = vld [vmem:[%s192 + $0x8b0] sm:$0xff]
      %v479 = vld [vmem:[%s192 + $0x8b8] sm:$0xff]
      %v480 = vld [vmem:[%s192 + $0x8c0] sm:$0xff]
      %v481 = vld [vmem:[%s192 + $0x8c8] sm:$0xff]
      %v482 = vld [vmem:[%s192 + $0x8d0] sm:$0xff]
      %v483 = vld [vmem:[%s192 + $0x8d8] sm:$0xff]
      %v484 = vld [vmem:[%s192 + $0x8e0] sm:$0xff]
      %v485 = vld [vmem:[%s192 + $0x8e8] sm:$0xff]
      %v486 = vld [vmem:[%s192 + $0x8f0] sm:$0xff]
      %v487 = vld [vmem:[%s192 + $0x8f8] sm:$0xff]
      %v488 = vld [vmem:[%s192 + $0x900] sm:$0xff]
      %v489 = vld [vmem:[%s192 + $0x908] sm:$0xff]
      %v490 = vld [vmem:[%s192 + $0x910] sm:$0xff]
      %v491 = vld [vmem:[%s192 + $0x918] sm:$0xff]
      %v492 = vld [vmem:[%s192 + $0x920] sm:$0xff]
      %v493 = vld [vmem:[%s192 + $0x928] sm:$0xff]
      %v494 = vld [vmem:[%s192 + $0x930] sm:$0xff]
      %v495 = vld [vmem:[%s192 + $0x938] sm:$0xff]
      %v496 = vld [vmem:[%s192 + $0x940] sm:$0xff]
      %v497 = vld [vmem:[%s192 + $0x948] sm:$0xff]
      %v498 = vld [vmem:[%s192 + $0x950] sm:$0xff]
      %v499 = vld [vmem:[%s192 + $0x958] sm:$0xff]
      %v500 = vld [vmem:[%s192 + $0x960] sm:$0xff]
      %v501 = vld [vmem:[%s192 + $0x968] sm:$0xff]
      %v502 = vld [vmem:[%s192 + $0x970] sm:$0xff]
      %v503 = vld [vmem:[%s192 + $0x978] sm:$0xff]
      %v504 = vld [vmem:[%s192 + $0x980] sm:$0xff]
      %v505 = vld [vmem:[%s192 + $0x988] sm:$0xff]
      %v506 = vld [vmem:[%s192 + $0x990] sm:$0xff]
      %v507 = vld [vmem:[%s192 + $0x998] sm:$0xff]
      %v508 = vld [vmem:[%s192 + $0x9a0] sm:$0xff]
      %v509 = vld [vmem:[%s192 + $0x9a8] sm:$0xff]
      %v510 = vld [vmem:[%s192 + $0x9b0] sm:$0xff]
      %v511 = vld [vmem:[%s192 + $0x9b8] sm:$0xff]
      %v512 = vld [vmem:[%s192 + $0x9c0] sm:$0xff]
      %v513 = vld [vmem:[%s192 + $0x9c8] sm:$0xff]
      %v514 = vld [vmem:[%s192 + $0x9d0] sm:$0xff]
      %v515 = vld [vmem:[%s192 + $0x9d8] sm:$0xff]
      %v516 = vld [vmem:[%s192 + $0x9e0] sm:$0xff]
      %v517 = vld [vmem:[%s192 + $0x9e8] sm:$0xff]
      %v518 = vld [vmem:[%s192 + $0x9f0] sm:$0xff]
      %v519 = vld [vmem:[%s192 + $0x9f8] sm:$0xff]
      %v520 = vld [vmem:[%s192 + $0xa00] sm:$0xff]
      %v521 = vld [vmem:[%s192 + $0xa08] sm:$0xff]
      %v522 = vld [vmem:[%s192 + $0xa10] sm:$0xff]
      %v523 = vld [vmem:[%s192 + $0xa18] sm:$0xff]
      %v524 = vld [vmem:[%s192 + $0xa20] sm:$0xff]
      %v525 = vld [vmem:[%s192 + $0xa28] sm:$0xff]
      %v526 = vld [vmem:[%s192 + $0xa30] sm:$0xff]
      %v527 = vld [vmem:[%s192 + $0xa38] sm:$0xff]
      %v528 = vld [vmem:[%s192 + $0xa40] sm:$0xff]
      %v529 = vld [vmem:[%s192 + $0xa48] sm:$0xff]
      %v530 = vld [vmem:[%s192 + $0xa50] sm:$0xff]
      %v531 = vld [vmem:[%s192 + $0xa58] sm:$0xff]
      %v532 = vld [vmem:[%s192 + $0xa60] sm:$0xff]
      %v533 = vld [vmem:[%s192 + $0xa68] sm:$0xff]
      %v534 = vld [vmem:[%s192 + $0xa70] sm:$0xff]
      %v535 = vld [vmem:[%s192 + $0xa78] sm:$0xff]
      %v536 = vld [vmem:[%s192 + $0xa80] sm:$0xff]
      %v537 = vld [vmem:[%s192 + $0xa88] sm:$0xff]
      %v538 = vld [vmem:[%s192 + $0xa90] sm:$0xff]
      %v539 = vld [vmem:[%s192 + $0xa98] sm:$0xff]
      %v540 = vld [vmem:[%s192 + $0xaa0] sm:$0xff]
      %v541 = vld [vmem:[%s192 + $0xaa8] sm:$0xff]
      %v542 = vld [vmem:[%s192 + $0xab0] sm:$0xff]
      %v543 = vld [vmem:[%s192 + $0xab8] sm:$0xff]
      %v544 = vld [vmem:[%s192 + $0xac0] sm:$0xff]
      %v545 = vld [vmem:[%s192 + $0xac8] sm:$0xff]
      %v546 = vld [vmem:[%s192 + $0xad0] sm:$0xff]
      %v547 = vld [vmem:[%s192 + $0xad8] sm:$0xff]
      %v548 = vld [vmem:[%s192 + $0xae0] sm:$0xff]
      %v549 = vld [vmem:[%s192 + $0xae8] sm:$0xff]
      %v550 = vld [vmem:[%s192 + $0xaf0] sm:$0xff]
      %v551 = vld [vmem:[%s192 + $0xaf8] sm:$0xff]
      %v552 = vld [vmem:[%s192 + $0xb00] sm:$0xff]
      %v553 = vld [vmem:[%s192 + $0xb08] sm:$0xff]
      %v554 = vld [vmem:[%s192 + $0xb10] sm:$0xff]
      %v555 = vld [vmem:[%s192 + $0xb18] sm:$0xff]
      %v556 = vld [vmem:[%s192 + $0xb20] sm:$0xff]
      %v557 = vld [vmem:[%s192 + $0xb28] sm:$0xff]
      %v558 = vld [vmem:[%s192 + $0xb30] sm:$0xff]
      %v559 = vld [vmem:[%s192 + $0xb38] sm:$0xff]
      %v560 = vld [vmem:[%s192 + $0xb40] sm:$0xff]
      %v561 = vld [vmem:[%s192 + $0xb48] sm:$0xff]
      %v562 = vld [vmem:[%s192 + $0xb50] sm:$0xff]
      %v563 = vld [vmem:[%s192 + $0xb58] sm:$0xff]
      %v564 = vld [vmem:[%s192 + $0xb60] sm:$0xff]
      %v565 = vld [vmem:[%s192 + $0xb68] sm:$0xff]
      %v566 = vld [vmem:[%s192 + $0xb70] sm:$0xff]
      %v567 = vld [vmem:[%s192 + $0xb78] sm:$0xff]
      %v568 = vld [vmem:[%s192 + $0xb80] sm:$0xff]
      %v569 = vld [vmem:[%s192 + $0xb88] sm:$0xff]
      %v570 = vld [vmem:[%s192 + $0xb90] sm:$0xff]
      %v571 = vld [vmem:[%s192 + $0xb98] sm:$0xff]
      %v572 = vld [vmem:[%s192 + $0xba0] sm:$0xff]
      %v573 = vld [vmem:[%s192 + $0xba8] sm:$0xff]
      %v574 = vld [vmem:[%s192 + $0xbb0] sm:$0xff]
      %v575 = vld [vmem:[%s192 + $0xbb8] sm:$0xff]
      %v576 = vld [vmem:[%s192 + $0xbc0] sm:$0xff]
      %v577 = vld [vmem:[%s192 + $0xbc8] sm:$0xff]
      %v578 = vld [vmem:[%s192 + $0xbd0] sm:$0xff]
      %v579 = vld [vmem:[%s192 + $0xbd8] sm:$0xff]
      %v580 = vld [vmem:[%s192 + $0xbe0] sm:$0xff]
      %v581 = vld [vmem:[%s192 + $0xbe8] sm:$0xff]
      %v582 = vld [vmem:[%s192 + $0xbf0] sm:$0xff]
      %v583 = vld [vmem:[%s192 + $0xbf8] sm:$0xff]
      %v584 = vld [vmem:[%s192 + $0xc00] sm:$0xff]
      %v585 = vld [vmem:[%s192 + $0xc08] sm:$0xff]
      %v586 = vld [vmem:[%s192 + $0xc10] sm:$0xff]
      %v587 = vld [vmem:[%s192 + $0xc18] sm:$0xff]
      %v588 = vld [vmem:[%s192 + $0xc20] sm:$0xff]
      %v589 = vld [vmem:[%s192 + $0xc28] sm:$0xff]
      %v590 = vld [vmem:[%s192 + $0xc30] sm:$0xff]
      %v591 = vld [vmem:[%s192 + $0xc38] sm:$0xff]
      %v592 = vld [vmem:[%s192 + $0xc40] sm:$0xff]
      %v593 = vld [vmem:[%s192 + $0xc48] sm:$0xff]
      %v594 = vld [vmem:[%s192 + $0xc50] sm:$0xff]
      %v595 = vld [vmem:[%s192 + $0xc58] sm:$0xff]
      %v596 = vld [vmem:[%s192 + $0xc60] sm:$0xff]
      %v597 = vld [vmem:[%s192 + $0xc68] sm:$0xff]
      %v598 = vld [vmem:[%s192 + $0xc70] sm:$0xff]
      %v599 = vld [vmem:[%s192 + $0xc78] sm:$0xff]
      %v600 = vld [vmem:[%s192 + $0xc80] sm:$0xff]
      %v601 = vld [vmem:[%s192 + $0xc88] sm:$0xff]
      %v602 = vld [vmem:[%s192 + $0xc90] sm:$0xff]
      %v603 = vld [vmem:[%s192 + $0xc98] sm:$0xff]
      %v604 = vld [vmem:[%s192 + $0xca0] sm:$0xff]
      %v605 = vld [vmem:[%s192 + $0xca8] sm:$0xff]
      %v606 = vld [vmem:[%s192 + $0xcb0] sm:$0xff]
      %v607 = vld [vmem:[%s192 + $0xcb8] sm:$0xff]
      %v608 = vld [vmem:[%s192 + $0xcc0] sm:$0xff]
      %v609 = vld [vmem:[%s192 + $0xcc8] sm:$0xff]
      %v610 = vld [vmem:[%s192 + $0xcd0] sm:$0xff]
      %v611 = vld [vmem:[%s192 + $0xcd8] sm:$0xff]
      %v612 = vld [vmem:[%s192 + $0xce0] sm:$0xff]
      %v613 = vld [vmem:[%s192 + $0xce8] sm:$0xff]
      %v614 = vld [vmem:[%s192 + $0xcf0] sm:$0xff]
      %v615 = vld [vmem:[%s192 + $0xcf8] sm:$0xff]
      %v616 = vld [vmem:[%s192 + $0xd00] sm:$0xff]
      %v617 = vld [vmem:[%s192 + $0xd08] sm:$0xff]
      %v618 = vld [vmem:[%s192 + $0xd10] sm:$0xff]
      %v619 = vld [vmem:[%s192 + $0xd18] sm:$0xff]
      %v620 = vld [vmem:[%s192 + $0xd20] sm:$0xff]
      %v621 = vld [vmem:[%s192 + $0xd28] sm:$0xff]
      %v622 = vld [vmem:[%s192 + $0xd30] sm:$0xff]
      %v623 = vld [vmem:[%s192 + $0xd38] sm:$0xff]
      %v624 = vld [vmem:[%s192 + $0xd40] sm:$0xff]
      %v625 = vld [vmem:[%s192 + $0xd48] sm:$0xff]
      %v626 = vld [vmem:[%s192 + $0xd50] sm:$0xff]
      %v627 = vld [vmem:[%s192 + $0xd58] sm:$0xff]
      %v628 = vld [vmem:[%s192 + $0xd60] sm:$0xff]
      %v629 = vld [vmem:[%s192 + $0xd68] sm:$0xff]
      %v630 = vld [vmem:[%s192 + $0xd70] sm:$0xff]
      %v631 = vld [vmem:[%s192 + $0xd78] sm:$0xff]
      %v632 = vld [vmem:[%s192 + $0xd80] sm:$0xff]
      %v633 = vld [vmem:[%s192 + $0xd88] sm:$0xff]
      %v634 = vld [vmem:[%s192 + $0xd90] sm:$0xff]
      %v635 = vld [vmem:[%s192 + $0xd98] sm:$0xff]
      %v636 = vld [vmem:[%s192 + $0xda0] sm:$0xff]
      %v637 = vld [vmem:[%s192 + $0xda8] sm:$0xff]
      %v638 = vld [vmem:[%s192 + $0xdb0] sm:$0xff]
      %v639 = vld [vmem:[%s192 + $0xdb8] sm:$0xff]
      %v640 = vld [vmem:[%s192 + $0xdc0] sm:$0xff]
      %v641 = vld [vmem:[%s192 + $0xdc8] sm:$0xff]
      %v642 = vld [vmem:[%s192 + $0xdd0] sm:$0xff]
      %v643 = vld [vmem:[%s192 + $0xdd8] sm:$0xff]
      %v644 = vld [vmem:[%s192 + $0xde0] sm:$0xff]
      %v645 = vld [vmem:[%s192 + $0xde8] sm:$0xff]
      %v646 = vld [vmem:[%s192 + $0xdf0] sm:$0xff]
      %v647 = vld [vmem:[%s192 + $0xdf8] sm:$0xff]
      %v648 = vld [vmem:[%s192 + $0xe00] sm:$0xff]
      %v649 = vld [vmem:[%s192 + $0xe08] sm:$0xff]
      %v650 = vld [vmem:[%s192 + $0xe10] sm:$0xff]
      %v651 = vld [vmem:[%s192 + $0xe18] sm:$0xff]
      %v652 = vld [vmem:[%s192 + $0xe20] sm:$0xff]
      %v653 = vld [vmem:[%s192 + $0xe28] sm:$0xff]
      %v654 = vld [vmem:[%s192 + $0xe30] sm:$0xff]
      %v655 = vld [vmem:[%s192 + $0xe38] sm:$0xff]
      %v656 = vld [vmem:[%s192 + $0xe40] sm:$0xff]
      %v657 = vld [vmem:[%s192 + $0xe48] sm:$0xff]
      %v658 = vld [vmem:[%s192 + $0xe50] sm:$0xff]
      %v659 = vld [vmem:[%s192 + $0xe58] sm:$0xff]
      %v660 = vld [vmem:[%s192 + $0xe60] sm:$0xff]
      %v661 = vld [vmem:[%s192 + $0xe68] sm:$0xff]
      %v662 = vld [vmem:[%s192 + $0xe70] sm:$0xff]
      %v663 = vld [vmem:[%s192 + $0xe78] sm:$0xff]
      %v664 = vld [vmem:[%s192 + $0xe80] sm:$0xff]
      %v665 = vld [vmem:[%s192 + $0xe88] sm:$0xff]
      %v666 = vld [vmem:[%s192 + $0xe90] sm:$0xff]
      %v667 = vld [vmem:[%s192 + $0xe98] sm:$0xff]
      %v668 = vld [vmem:[%s192 + $0xea0] sm:$0xff]
      %v669 = vld [vmem:[%s192 + $0xea8] sm:$0xff]
      %v670 = vld [vmem:[%s192 + $0xeb0] sm:$0xff]
      %v671 = vld [vmem:[%s192 + $0xeb8] sm:$0xff]
      %v672 = vld [vmem:[%s192 + $0xec0] sm:$0xff]
      %v673 = vld [vmem:[%s192 + $0xec8] sm:$0xff]
      %v674 = vld [vmem:[%s192 + $0xed0] sm:$0xff]
      %v675 = vld [vmem:[%s192 + $0xed8] sm:$0xff]
      %v676 = vld [vmem:[%s192 + $0xee0] sm:$0xff]
      %v677 = vld [vmem:[%s192 + $0xee8] sm:$0xff]
      %v678 = vld [vmem:[%s192 + $0xef0] sm:$0xff]
      %v679 = vld [vmem:[%s192 + $0xef8] sm:$0xff]
      %v680 = vld [vmem:[%s192 + $0xf00] sm:$0xff]
      %v681 = vld [vmem:[%s192 + $0xf08] sm:$0xff]
      %v682 = vld [vmem:[%s192 + $0xf10] sm:$0xff]
      %v683 = vld [vmem:[%s192 + $0xf18] sm:$0xff]
      %v684 = vld [vmem:[%s192 + $0xf20] sm:$0xff]
      %v685 = vld [vmem:[%s192 + $0xf28] sm:$0xff]
      %v686 = vld [vmem:[%s192 + $0xf30] sm:$0xff]
      %v687 = vld [vmem:[%s192 + $0xf38] sm:$0xff]
      %v688 = vld [vmem:[%s192 + $0xf40] sm:$0xff]
      %v689 = vld [vmem:[%s192 + $0xf48] sm:$0xff]
      %v690 = vld [vmem:[%s192 + $0xf50] sm:$0xff]
      %v691 = vld [vmem:[%s192 + $0xf58] sm:$0xff]
      %v692 = vld [vmem:[%s192 + $0xf60] sm:$0xff]
      %v693 = vld [vmem:[%s192 + $0xf68] sm:$0xff]
      %v694 = vld [vmem:[%s192 + $0xf70] sm:$0xff]
      %v695 = vld [vmem:[%s192 + $0xf78] sm:$0xff]
      %v696 = vld [vmem:[%s192 + $0xf80] sm:$0xff]
      %v697 = vld [vmem:[%s192 + $0xf88] sm:$0xff]
      %v698 = vld [vmem:[%s192 + $0xf90] sm:$0xff]
      %v699 = vld [vmem:[%s192 + $0xf98] sm:$0xff]
      %v700 = vld [vmem:[%s192 + $0xfa0] sm:$0xff]
      %v701 = vld [vmem:[%s192 + $0xfa8] sm:$0xff]
      %v702 = vld [vmem:[%s192 + $0xfb0] sm:$0xff]
      %v703 = vld [vmem:[%s192 + $0xfb8] sm:$0xff]
      %v704 = vld [vmem:[%s192 + $0xfc0] sm:$0xff]
      %v705 = vld [vmem:[%s192 + $0xfc8] sm:$0xff]
      %v706 = vld [vmem:[%s192 + $0xfd0] sm:$0xff]
      %v707 = vld [vmem:[%s192 + $0xfd8] sm:$0xff]
      %v708 = vld [vmem:[%s192 + $0xfe0] sm:$0xff]
      %v709 = vld [vmem:[%s192 + $0xfe8] sm:$0xff]
      %v710 = vld [vmem:[%s192 + $0xff0] sm:$0xff]
      %v711 = vld [vmem:[%s192 + $0xff8] sm:$0xff]
      %v712 = vpack.c.bf16 %v201, %v200
      %v713 = vpack.c.bf16 %v203, %v202
      %v714 = vpack.c.bf16 %v205, %v204
      %v715 = vpack.c.bf16 %v207, %v206
      %v716 = vpack.c.bf16 %v209, %v208
      %v717 = vpack.c.bf16 %v211, %v210
      %v718 = vpack.c.bf16 %v213, %v212
      %v719 = vpack.c.bf16 %v215, %v214
      %v720 = vpack.c.bf16 %v217, %v216
      %v721 = vpack.c.bf16 %v219, %v218
      %v722 = vpack.c.bf16 %v221, %v220
      %v723 = vpack.c.bf16 %v223, %v222
      %v724 = vpack.c.bf16 %v225, %v224
      %v725 = vpack.c.bf16 %v227, %v226
      %v726 = vpack.c.bf16 %v229, %v228
      %v727 = vpack.c.bf16 %v231, %v230
      %v728 = vpack.c.bf16 %v233, %v232
      %v729 = vpack.c.bf16 %v235, %v234
      %v730 = vpack.c.bf16 %v237, %v236
      %v731 = vpack.c.bf16 %v239, %v238
      %v732 = vpack.c.bf16 %v241, %v240
      %v733 = vpack.c.bf16 %v243, %v242
      %v734 = vpack.c.bf16 %v245, %v244
      %v735 = vpack.c.bf16 %v247, %v246
      %v736 = vpack.c.bf16 %v249, %v248
      %v737 = vpack.c.bf16 %v251, %v250
      %v738 = vpack.c.bf16 %v253, %v252
      %v739 = vpack.c.bf16 %v255, %v254
      %v740 = vpack.c.bf16 %v257, %v256
      %v741 = vpack.c.bf16 %v259, %v258
      %v742 = vpack.c.bf16 %v261, %v260
      %v743 = vpack.c.bf16 %v263, %v262
      %v744 = vpack.c.bf16 %v265, %v264
      %v745 = vpack.c.bf16 %v267, %v266
      %v746 = vpack.c.bf16 %v269, %v268
      %v747 = vpack.c.bf16 %v271, %v270
      %v748 = vpack.c.bf16 %v273, %v272
      %v749 = vpack.c.bf16 %v275, %v274
      %v750 = vpack.c.bf16 %v277, %v276
      %v751 = vpack.c.bf16 %v279, %v278
      %v752 = vpack.c.bf16 %v281, %v280
      %v753 = vpack.c.bf16 %v283, %v282
      %v754 = vpack.c.bf16 %v285, %v284
      %v755 = vpack.c.bf16 %v287, %v286
      %v756 = vpack.c.bf16 %v289, %v288
      %v757 = vpack.c.bf16 %v291, %v290
      %v758 = vpack.c.bf16 %v293, %v292
      %v759 = vpack.c.bf16 %v295, %v294
      %v760 = vpack.c.bf16 %v297, %v296
      %v761 = vpack.c.bf16 %v299, %v298
      %v762 = vpack.c.bf16 %v301, %v300
      %v763 = vpack.c.bf16 %v303, %v302
      %v764 = vpack.c.bf16 %v305, %v304
      %v765 = vpack.c.bf16 %v307, %v306
      %v766 = vpack.c.bf16 %v309, %v308
      %v767 = vpack.c.bf16 %v311, %v310
      %v768 = vpack.c.bf16 %v313, %v312
      %v769 = vpack.c.bf16 %v315, %v314
      %v770 = vpack.c.bf16 %v317, %v316
      %v771 = vpack.c.bf16 %v319, %v318
      %v772 = vpack.c.bf16 %v321, %v320
      %v773 = vpack.c.bf16 %v323, %v322
      %v774 = vpack.c.bf16 %v325, %v324
      %v775 = vpack.c.bf16 %v327, %v326
      %v776 = vpack.c.bf16 %v329, %v328
      %v777 = vpack.c.bf16 %v331, %v330
      %v778 = vpack.c.bf16 %v333, %v332
      %v779 = vpack.c.bf16 %v335, %v334
      %v780 = vpack.c.bf16 %v337, %v336
      %v781 = vpack.c.bf16 %v339, %v338
      %v782 = vpack.c.bf16 %v341, %v340
      %v783 = vpack.c.bf16 %v343, %v342
      %v784 = vpack.c.bf16 %v345, %v344
      %v785 = vpack.c.bf16 %v347, %v346
      %v786 = vpack.c.bf16 %v349, %v348
      %v787 = vpack.c.bf16 %v351, %v350
      %v788 = vpack.c.bf16 %v353, %v352
      %v789 = vpack.c.bf16 %v355, %v354
      %v790 = vpack.c.bf16 %v357, %v356
      %v791 = vpack.c.bf16 %v359, %v358
      %v792 = vpack.c.bf16 %v361, %v360
      %v793 = vpack.c.bf16 %v363, %v362
      %v794 = vpack.c.bf16 %v365, %v364
      %v795 = vpack.c.bf16 %v367, %v366
      %v796 = vpack.c.bf16 %v369, %v368
      %v797 = vpack.c.bf16 %v371, %v370
      %v798 = vpack.c.bf16 %v373, %v372
      %v799 = vpack.c.bf16 %v375, %v374
      %v800 = vpack.c.bf16 %v377, %v376
      %v801 = vpack.c.bf16 %v379, %v378
      %v802 = vpack.c.bf16 %v381, %v380
      %v803 = vpack.c.bf16 %v383, %v382
      %v804 = vpack.c.bf16 %v385, %v384
      %v805 = vpack.c.bf16 %v387, %v386
      %v806 = vpack.c.bf16 %v389, %v388
      %v807 = vpack.c.bf16 %v391, %v390
      %v808 = vpack.c.bf16 %v393, %v392
      %v809 = vpack.c.bf16 %v395, %v394
      %v810 = vpack.c.bf16 %v397, %v396
      %v811 = vpack.c.bf16 %v399, %v398
      %v812 = vpack.c.bf16 %v401, %v400
      %v813 = vpack.c.bf16 %v403, %v402
      %v814 = vpack.c.bf16 %v405, %v404
      %v815 = vpack.c.bf16 %v407, %v406
      %v816 = vpack.c.bf16 %v409, %v408
      %v817 = vpack.c.bf16 %v411, %v410
      %v818 = vpack.c.bf16 %v413, %v412
      %v819 = vpack.c.bf16 %v415, %v414
      %v820 = vpack.c.bf16 %v417, %v416
      %v821 = vpack.c.bf16 %v419, %v418
      %v822 = vpack.c.bf16 %v421, %v420
      %v823 = vpack.c.bf16 %v423, %v422
      %v824 = vpack.c.bf16 %v425, %v424
      %v825 = vpack.c.bf16 %v427, %v426
      %v826 = vpack.c.bf16 %v429, %v428
      %v827 = vpack.c.bf16 %v431, %v430
      %v828 = vpack.c.bf16 %v433, %v432
      %v829 = vpack.c.bf16 %v435, %v434
      %v830 = vpack.c.bf16 %v437, %v436
      %v831 = vpack.c.bf16 %v439, %v438
      %v832 = vpack.c.bf16 %v441, %v440
      %v833 = vpack.c.bf16 %v443, %v442
      %v834 = vpack.c.bf16 %v445, %v444
      %v835 = vpack.c.bf16 %v447, %v446
      %v836 = vpack.c.bf16 %v449, %v448
      %v837 = vpack.c.bf16 %v451, %v450
      %v838 = vpack.c.bf16 %v453, %v452
      %v839 = vpack.c.bf16 %v455, %v454
      %v840 = vpack.c.bf16 %v457, %v456
      %v841 = vpack.c.bf16 %v459, %v458
      %v842 = vpack.c.bf16 %v461, %v460
      %v843 = vpack.c.bf16 %v463, %v462
      %v844 = vpack.c.bf16 %v465, %v464
      %v845 = vpack.c.bf16 %v467, %v466
      %v846 = vpack.c.bf16 %v469, %v468
      %v847 = vpack.c.bf16 %v471, %v470
      %v848 = vpack.c.bf16 %v473, %v472
      %v849 = vpack.c.bf16 %v475, %v474
      %v850 = vpack.c.bf16 %v477, %v476
      %v851 = vpack.c.bf16 %v479, %v478
      %v852 = vpack.c.bf16 %v481, %v480
      %v853 = vpack.c.bf16 %v483, %v482
      %v854 = vpack.c.bf16 %v485, %v484
      %v855 = vpack.c.bf16 %v487, %v486
      %v856 = vpack.c.bf16 %v489, %v488
      %v857 = vpack.c.bf16 %v491, %v490
      %v858 = vpack.c.bf16 %v493, %v492
      %v859 = vpack.c.bf16 %v495, %v494
      %v860 = vpack.c.bf16 %v497, %v496
      %v861 = vpack.c.bf16 %v499, %v498
      %v862 = vpack.c.bf16 %v501, %v500
      %v863 = vpack.c.bf16 %v503, %v502
      %v864 = vpack.c.bf16 %v505, %v504
      %v865 = vpack.c.bf16 %v507, %v506
      %v866 = vpack.c.bf16 %v509, %v508
      %v867 = vpack.c.bf16 %v511, %v510
      %v868 = vpack.c.bf16 %v513, %v512
      %v869 = vpack.c.bf16 %v515, %v514
      %v870 = vpack.c.bf16 %v517, %v516
      %v871 = vpack.c.bf16 %v519, %v518
      %v872 = vpack.c.bf16 %v521, %v520
      %v873 = vpack.c.bf16 %v523, %v522
      %v874 = vpack.c.bf16 %v525, %v524
      %v875 = vpack.c.bf16 %v527, %v526
      %v876 = vpack.c.bf16 %v529, %v528
      %v877 = vpack.c.bf16 %v531, %v530
      %v878 = vpack.c.bf16 %v533, %v532
      %v879 = vpack.c.bf16 %v535, %v534
      %v880 = vpack.c.bf16 %v537, %v536
      %v881 = vpack.c.bf16 %v539, %v538
      %v882 = vpack.c.bf16 %v541, %v540
      %v883 = vpack.c.bf16 %v543, %v542
      %v884 = vpack.c.bf16 %v545, %v544
      %v885 = vpack.c.bf16 %v547, %v546
      %v886 = vpack.c.bf16 %v549, %v548
      %v887 = vpack.c.bf16 %v551, %v550
      %v888 = vpack.c.bf16 %v553, %v552
      %v889 = vpack.c.bf16 %v555, %v554
      %v890 = vpack.c.bf16 %v557, %v556
      %v891 = vpack.c.bf16 %v559, %v558
      %v892 = vpack.c.bf16 %v561, %v560
      %v893 = vpack.c.bf16 %v563, %v562
      %v894 = vpack.c.bf16 %v565, %v564
      %v895 = vpack.c.bf16 %v567, %v566
      %v896 = vpack.c.bf16 %v569, %v568
      %v897 = vpack.c.bf16 %v571, %v570
      %v898 = vpack.c.bf16 %v573, %v572
      %v899 = vpack.c.bf16 %v575, %v574
      %v900 = vpack.c.bf16 %v577, %v576
      %v901 = vpack.c.bf16 %v579, %v578
      %v902 = vpack.c.bf16 %v581, %v580
      %v903 = vpack.c.bf16 %v583, %v582
      %v904 = vpack.c.bf16 %v585, %v584
      %v905 = vpack.c.bf16 %v587, %v586
      %v906 = vpack.c.bf16 %v589, %v588
      %v907 = vpack.c.bf16 %v591, %v590
      %v908 = vpack.c.bf16 %v593, %v592
      %v909 = vpack.c.bf16 %v595, %v594
      %v910 = vpack.c.bf16 %v597, %v596
      %v911 = vpack.c.bf16 %v599, %v598
      %v912 = vpack.c.bf16 %v601, %v600
      %v913 = vpack.c.bf16 %v603, %v602
      %v914 = vpack.c.bf16 %v605, %v604
      %v915 = vpack.c.bf16 %v607, %v606
      %v916 = vpack.c.bf16 %v609, %v608
      %v917 = vpack.c.bf16 %v611, %v610
      %v918 = vpack.c.bf16 %v613, %v612
      %v919 = vpack.c.bf16 %v615, %v614
      %v920 = vpack.c.bf16 %v617, %v616
      %v921 = vpack.c.bf16 %v619, %v618
      %v922 = vpack.c.bf16 %v621, %v620
      %v923 = vpack.c.bf16 %v623, %v622
      %v924 = vpack.c.bf16 %v625, %v624
      %v925 = vpack.c.bf16 %v627, %v626
      %v926 = vpack.c.bf16 %v629, %v628
      %v927 = vpack.c.bf16 %v631, %v630
      %v928 = vpack.c.bf16 %v633, %v632
      %v929 = vpack.c.bf16 %v635, %v634
      %v930 = vpack.c.bf16 %v637, %v636
      %v931 = vpack.c.bf16 %v639, %v638
      %v932 = vpack.c.bf16 %v641, %v640
      %v933 = vpack.c.bf16 %v643, %v642
      %v934 = vpack.c.bf16 %v645, %v644
      %v935 = vpack.c.bf16 %v647, %v646
      %v936 = vpack.c.bf16 %v649, %v648
      %v937 = vpack.c.bf16 %v651, %v650
      %v938 = vpack.c.bf16 %v653, %v652
      %v939 = vpack.c.bf16 %v655, %v654
      %v940 = vpack.c.bf16 %v657, %v656
      %v941 = vpack.c.bf16 %v659, %v658
      %v942 = vpack.c.bf16 %v661, %v660
      %v943 = vpack.c.bf16 %v663, %v662
      %v944 = vpack.c.bf16 %v665, %v664
      %v945 = vpack.c.bf16 %v667, %v666
      %v946 = vpack.c.bf16 %v669, %v668
      %v947 = vpack.c.bf16 %v671, %v670
      %v948 = vpack.c.bf16 %v673, %v672
      %v949 = vpack.c.bf16 %v675, %v674
      %v950 = vpack.c.bf16 %v677, %v676
      %v951 = vpack.c.bf16 %v679, %v678
      %v952 = vpack.c.bf16 %v681, %v680
      %v953 = vpack.c.bf16 %v683, %v682
      %v954 = vpack.c.bf16 %v685, %v684
      %v955 = vpack.c.bf16 %v687, %v686
      %v956 = vpack.c.bf16 %v689, %v688
      %v957 = vpack.c.bf16 %v691, %v690
      %v958 = vpack.c.bf16 %v693, %v692
      %v959 = vpack.c.bf16 %v695, %v694
      %v960 = vpack.c.bf16 %v697, %v696
      %v961 = vpack.c.bf16 %v699, %v698
      %v962 = vpack.c.bf16 %v701, %v700
      %v963 = vpack.c.bf16 %v703, %v702
      %v964 = vpack.c.bf16 %v705, %v704
      %v965 = vpack.c.bf16 %v707, %v706
      %v966 = vpack.c.bf16 %v709, %v708
      %v967 = vpack.c.bf16 %v711, %v710
      %v968 = vld [vmem:[%s1] sm:$0xff]
      %v969 = vld [vmem:[%s1 + $0x8] sm:$0xff]
      %v970 = vld [vmem:[%s1 + $0x10] sm:$0xff]
      %v971 = vld [vmem:[%s1 + $0x18] sm:$0xff]
      %s972 = sld [smem:[#allocation2]]
      %v973 = vstv %s972
      %v978 = vcombine.high %v968, %v968
      %v980 = vunpack.c.l.s4 1966171168
      %v981 = vunpack.c.0.s8 %v980
      %v982 = vlaneseq
      %v983 = vshrl.u32 %v982, 7
      %v984 = vsub.s32 %v981, %v983
      %v985 = vrot.slane %v968, %v984
      %v987 = vunpack.c.l.s4 1966171168
      %v988 = vunpack.c.0.s8 %v987
      %v989 = vlaneseq
      %v990 = vshrl.u32 %v989, 7
      %v991 = vsub.s32 %v988, %v990
      %v992 = vrot.slane %v978, %v991
      %v993 = vcombine.high %v985, %v985
      %v994 = vcombine.high %v992, %v992
      %v996 = vunpack.c.l.s4 1966171168
      %v997 = vunpack.c.0.s8 %v996
      %v998 = vlaneseq
      %v999 = vshrl.u32 %v998, 7
      %v1000 = vsub.s32 %v997, %v999
      %v1001 = vrot.slane %v985, %v1000
      %v1003 = vunpack.c.l.s4 1966171168
      %v1004 = vunpack.c.0.s8 %v1003
      %v1005 = vlaneseq
      %v1006 = vshrl.u32 %v1005, 7
      %v1007 = vsub.s32 %v1004, %v1006
      %v1008 = vrot.slane %v992, %v1007
      %v1010 = vunpack.c.l.s4 1966171168
      %v1011 = vunpack.c.0.s8 %v1010
      %v1012 = vlaneseq
      %v1013 = vshrl.u32 %v1012, 7
      %v1014 = vsub.s32 %v1011, %v1013
      %v1015 = vrot.slane %v993, %v1014
      %v1017 = vunpack.c.l.s4 1966171168
      %v1018 = vunpack.c.0.s8 %v1017
      %v1019 = vlaneseq
      %v1020 = vshrl.u32 %v1019, 7
      %v1021 = vsub.s32 %v1018, %v1020
      %v1022 = vrot.slane %v994, %v1021
      %v1023 = vcombine.high %v1001, %v1001
      %v1024 = vcombine.high %v1008, %v1008
      %v1025 = vcombine.high %v1015, %v1015
      %v1026 = vcombine.high %v1022, %v1022
      %v1027 = vcombine.high %v969, %v969
      %v1029 = vunpack.c.l.s4 1966171168
      %v1030 = vunpack.c.0.s8 %v1029
      %v1031 = vlaneseq
      %v1032 = vshrl.u32 %v1031, 7
      %v1033 = vsub.s32 %v1030, %v1032
      %v1034 = vrot.slane %v969, %v1033
      %v1036 = vunpack.c.l.s4 1966171168
      %v1037 = vunpack.c.0.s8 %v1036
      %v1038 = vlaneseq
      %v1039 = vshrl.u32 %v1038, 7
      %v1040 = vsub.s32 %v1037, %v1039
      %v1041 = vrot.slane %v1027, %v1040
      %v1042 = vcombine.high %v1034, %v1034
      %v1043 = vcombine.high %v1041, %v1041
      %v1045 = vunpack.c.l.s4 1966171168
      %v1046 = vunpack.c.0.s8 %v1045
      %v1047 = vlaneseq
      %v1048 = vshrl.u32 %v1047, 7
      %v1049 = vsub.s32 %v1046, %v1048
      %v1050 = vrot.slane %v1034, %v1049
      %v1052 = vunpack.c.l.s4 1966171168
      %v1053 = vunpack.c.0.s8 %v1052
      %v1054 = vlaneseq
      %v1055 = vshrl.u32 %v1054, 7
      %v1056 = vsub.s32 %v1053, %v1055
      %v1057 = vrot.slane %v1041, %v1056
      %v1059 = vunpack.c.l.s4 1966171168
      %v1060 = vunpack.c.0.s8 %v1059
      %v1061 = vlaneseq
      %v1062 = vshrl.u32 %v1061, 7
      %v1063 = vsub.s32 %v1060, %v1062
      %v1064 = vrot.slane %v1042, %v1063
      %v1066 = vunpack.c.l.s4 1966171168
      %v1067 = vunpack.c.0.s8 %v1066
      %v1068 = vlaneseq
      %v1069 = vshrl.u32 %v1068, 7
      %v1070 = vsub.s32 %v1067, %v1069
      %v1071 = vrot.slane %v1043, %v1070
      %v1072 = vcombine.high %v1050, %v1050
      %v1073 = vcombine.high %v1057, %v1057
      %v1074 = vcombine.high %v1064, %v1064
      %v1075 = vcombine.high %v1071, %v1071
      %v1076 = vcombine.high %v970, %v970
      %v1078 = vunpack.c.l.s4 1966171168
      %v1079 = vunpack.c.0.s8 %v1078
      %v1080 = vlaneseq
      %v1081 = vshrl.u32 %v1080, 7
      %v1082 = vsub.s32 %v1079, %v1081
      %v1083 = vrot.slane %v970, %v1082
      %v1085 = vunpack.c.l.s4 1966171168
      %v1086 = vunpack.c.0.s8 %v1085
      %v1087 = vlaneseq
      %v1088 = vshrl.u32 %v1087, 7
      %v1089 = vsub.s32 %v1086, %v1088
      %v1090 = vrot.slane %v1076, %v1089
      %v1091 = vcombine.high %v1083, %v1083
      %v1092 = vcombine.high %v1090, %v1090
      %v1094 = vunpack.c.l.s4 1966171168
      %v1095 = vunpack.c.0.s8 %v1094
      %v1096 = vlaneseq
      %v1097 = vshrl.u32 %v1096, 7
      %v1098 = vsub.s32 %v1095, %v1097
      %v1099 = vrot.slane %v1083, %v1098
      %v1101 = vunpack.c.l.s4 1966171168
      %v1102 = vunpack.c.0.s8 %v1101
      %v1103 = vlaneseq
      %v1104 = vshrl.u32 %v1103, 7
      %v1105 = vsub.s32 %v1102, %v1104
      %v1106 = vrot.slane %v1090, %v1105
      %v1108 = vunpack.c.l.s4 1966171168
      %v1109 = vunpack.c.0.s8 %v1108
      %v1110 = vlaneseq
      %v1111 = vshrl.u32 %v1110, 7
      %v1112 = vsub.s32 %v1109, %v1111
      %v1113 = vrot.slane %v1091, %v1112
      %v1115 = vunpack.c.l.s4 1966171168
      %v1116 = vunpack.c.0.s8 %v1115
      %v1117 = vlaneseq
      %v1118 = vshrl.u32 %v1117, 7
      %v1119 = vsub.s32 %v1116, %v1118
      %v1120 = vrot.slane %v1092, %v1119
      %v1121 = vcombine.high %v1099, %v1099
      %v1122 = vcombine.high %v1106, %v1106
      %v1123 = vcombine.high %v1113, %v1113
      %v1124 = vcombine.high %v1120, %v1120
      %v1125 = vcombine.high %v971, %v971
      %v1127 = vunpack.c.l.s4 1966171168
      %v1128 = vunpack.c.0.s8 %v1127
      %v1129 = vlaneseq
      %v1130 = vshrl.u32 %v1129, 7
      %v1131 = vsub.s32 %v1128, %v1130
      %v1132 = vrot.slane %v971, %v1131
      %v1134 = vunpack.c.l.s4 1966171168
      %v1135 = vunpack.c.0.s8 %v1134
      %v1136 = vlaneseq
      %v1137 = vshrl.u32 %v1136, 7
      %v1138 = vsub.s32 %v1135, %v1137
      %v1139 = vrot.slane %v1125, %v1138
      %v1140 = vcombine.high %v1132, %v1132
      %v1141 = vcombine.high %v1139, %v1139
      %v1143 = vunpack.c.l.s4 1966171168
      %v1144 = vunpack.c.0.s8 %v1143
      %v1145 = vlaneseq
      %v1146 = vshrl.u32 %v1145, 7
      %v1147 = vsub.s32 %v1144, %v1146
      %v1148 = vrot.slane %v1132, %v1147
      %v1150 = vunpack.c.l.s4 1966171168
      %v1151 = vunpack.c.0.s8 %v1150
      %v1152 = vlaneseq
      %v1153 = vshrl.u32 %v1152, 7
      %v1154 = vsub.s32 %v1151, %v1153
      %v1155 = vrot.slane %v1139, %v1154
      %v1157 = vunpack.c.l.s4 1966171168
      %v1158 = vunpack.c.0.s8 %v1157
      %v1159 = vlaneseq
      %v1160 = vshrl.u32 %v1159, 7
      %v1161 = vsub.s32 %v1158, %v1160
      %v1162 = vrot.slane %v1140, %v1161
      %v1164 = vunpack.c.l.s4 1966171168
      %v1165 = vunpack.c.0.s8 %v1164
      %v1166 = vlaneseq
      %v1167 = vshrl.u32 %v1166, 7
      %v1168 = vsub.s32 %v1165, %v1167
      %v1169 = vrot.slane %v1141, %v1168
      %v1170 = vcombine.high %v1148, %v1148
      %v1171 = vcombine.high %v1155, %v1155
      %v1172 = vcombine.high %v1162, %v1162
      %v1173 = vcombine.high %v1169, %v1169
      %1206 = vmatprep.subr.bf16.mxu0 0
      %1207 = vmatpush1.bf16.msra.mxu0 %v719
      %1208 = vmatprep.subr.bf16.mxu0 0
      %1209 = vmatpush1.bf16.msra.mxu0 %v718
      %1210 = vmatprep.subr.bf16.mxu0 0
      %1211 = vmatpush1.bf16.msra.mxu0 %v717
      %1212 = vmatprep.subr.bf16.mxu0 0
      %1213 = vmatpush1.bf16.msra.mxu0 %v716
      %1214 = vmatprep.subr.bf16.mxu0 0
      %1215 = vmatpush1.bf16.msra.mxu0 %v715
      %1216 = vmatprep.subr.bf16.mxu0 0
      %1217 = vmatpush1.bf16.msra.mxu0 %v714
      %1218 = vmatprep.subr.bf16.mxu0 0
      %1219 = vmatpush1.bf16.msra.mxu0 %v713
      %1220 = vmatprep.subr.bf16.mxu0 0
      %1221 = vmatpush1.bf16.msra.mxu0 %v712
      %1222 = vmatprep.subr.bf16.mxu0 0
      %1223 = vmatpush2.bf16.msra.mxu0 %v727
      %1224 = vmatprep.subr.bf16.mxu0 0
      %1225 = vmatpush2.bf16.msra.mxu0 %v726
      %1226 = vmatprep.subr.bf16.mxu0 0
      %1227 = vmatpush2.bf16.msra.mxu0 %v725
      %1228 = vmatprep.subr.bf16.mxu0 0
      %1229 = vmatpush2.bf16.msra.mxu0 %v724
      %1230 = vmatprep.subr.bf16.mxu0 0
      %1231 = vmatpush2.bf16.msra.mxu0 %v723
      %1232 = vmatprep.subr.bf16.mxu0 0
      %1233 = vmatpush2.bf16.msra.mxu0 %v722
      %1234 = vmatprep.subr.bf16.mxu0 0
      %1235 = vmatpush2.bf16.msra.mxu0 %v721
      %1236 = vmatprep.subr.bf16.mxu0 0
      %1237 = vmatpush2.bf16.msra.mxu0 %v720
      %1238 = vmatprep.mubr.bf16.mxu0 %v1015
      %1239 = vmatmul.mubr.bf16.gmra.mxu0 %v1001
      %v1240 = vpop.f32.mrf.mxu0
      %v1241 = vadd.f32 %v973, %v1240
      %v1242 = vpop.f32.mrf.mxu0
      %v1243 = vpop.f32.mrf.mxu0
      %v1244 = vpop.f32.mrf.mxu0
      %1245 = vdwg.mxu0
      %1246 = vmatprep.subr.bf16.mxu0 0
      %1247 = vmatpush1.bf16.msra.mxu0 %v735
      %1248 = vmatprep.subr.bf16.mxu0 0
      %1249 = vmatpush1.bf16.msra.mxu0 %v734
      %1250 = vmatprep.subr.bf16.mxu0 0
      %1251 = vmatpush1.bf16.msra.mxu0 %v733
      %1252 = vmatprep.subr.bf16.mxu0 0
      %1253 = vmatpush1.bf16.msra.mxu0 %v732
      %1254 = vmatprep.subr.bf16.mxu0 0
      %1255 = vmatpush1.bf16.msra.mxu0 %v731
      %1256 = vmatprep.subr.bf16.mxu0 0
      %1257 = vmatpush1.bf16.msra.mxu0 %v730
      %1258 = vmatprep.subr.bf16.mxu0 0
      %1259 = vmatpush1.bf16.msra.mxu0 %v729
      %1260 = vmatprep.subr.bf16.mxu0 0
      %1261 = vmatpush1.bf16.msra.mxu0 %v728
      %1262 = vmatprep.subr.bf16.mxu0 0
      %1263 = vmatpush2.bf16.msra.mxu0 %v743
      %1264 = vmatprep.subr.bf16.mxu0 0
      %1265 = vmatpush2.bf16.msra.mxu0 %v742
      %1266 = vmatprep.subr.bf16.mxu0 0
      %1267 = vmatpush2.bf16.msra.mxu0 %v741
      %1268 = vmatprep.subr.bf16.mxu0 0
      %1269 = vmatpush2.bf16.msra.mxu0 %v740
      %1270 = vmatprep.subr.bf16.mxu0 0
      %1271 = vmatpush2.bf16.msra.mxu0 %v739
      %1272 = vmatprep.subr.bf16.mxu0 0
      %1273 = vmatpush2.bf16.msra.mxu0 %v738
      %1274 = vmatprep.subr.bf16.mxu0 0
      %1275 = vmatpush2.bf16.msra.mxu0 %v737
      %1276 = vmatprep.subr.bf16.mxu0 0
      %1277 = vmatpush2.bf16.msra.mxu0 %v736
      %1278 = vmatprep.mubr.bf16.mxu0 %v1025
      %1279 = vmatmul.mubr.bf16.gmra.mxu0 %v1023
      %v1280 = vpop.f32.mrf.mxu0
      %v1281 = vadd.f32 %v1241, %v1280
      %v1282 = vpop.f32.mrf.mxu0
      %v1283 = vpop.f32.mrf.mxu0
      %v1284 = vpop.f32.mrf.mxu0
      %1285 = vdwg.mxu0
      %1286 = vmatprep.subr.bf16.mxu0 0
      %1287 = vmatpush1.bf16.msra.mxu0 %v751
      %1288 = vmatprep.subr.bf16.mxu0 0
      %1289 = vmatpush1.bf16.msra.mxu0 %v750
      %1290 = vmatprep.subr.bf16.mxu0 0
      %1291 = vmatpush1.bf16.msra.mxu0 %v749
      %1292 = vmatprep.subr.bf16.mxu0 0
      %1293 = vmatpush1.bf16.msra.mxu0 %v748
      %1294 = vmatprep.subr.bf16.mxu0 0
      %1295 = vmatpush1.bf16.msra.mxu0 %v747
      %1296 = vmatprep.subr.bf16.mxu0 0
      %1297 = vmatpush1.bf16.msra.mxu0 %v746
      %1298 = vmatprep.subr.bf16.mxu0 0
      %1299 = vmatpush1.bf16.msra.mxu0 %v745
      %1300 = vmatprep.subr.bf16.mxu0 0
      %1301 = vmatpush1.bf16.msra.mxu0 %v744
      %1302 = vmatprep.subr.bf16.mxu0 0
      %1303 = vmatpush2.bf16.msra.mxu0 %v759
      %1304 = vmatprep.subr.bf16.mxu0 0
      %1305 = vmatpush2.bf16.msra.mxu0 %v758
      %1306 = vmatprep.subr.bf16.mxu0 0
      %1307 = vmatpush2.bf16.msra.mxu0 %v757
      %1308 = vmatprep.subr.bf16.mxu0 0
      %1309 = vmatpush2.bf16.msra.mxu0 %v756
      %1310 = vmatprep.subr.bf16.mxu0 0
      %1311 = vmatpush2.bf16.msra.mxu0 %v755
      %1312 = vmatprep.subr.bf16.mxu0 0
      %1313 = vmatpush2.bf16.msra.mxu0 %v754
      %1314 = vmatprep.subr.bf16.mxu0 0
      %1315 = vmatpush2.bf16.msra.mxu0 %v753
      %1316 = vmatprep.subr.bf16.mxu0 0
      %1317 = vmatpush2.bf16.msra.mxu0 %v752
      %1318 = vmatprep.mubr.bf16.mxu0 %v1022
      %1319 = vmatmul.mubr.bf16.gmra.mxu0 %v1008
      %v1320 = vpop.f32.mrf.mxu0
      %v1321 = vadd.f32 %v1281, %v1320
      %v1322 = vpop.f32.mrf.mxu0
      %v1323 = vpop.f32.mrf.mxu0
      %v1324 = vpop.f32.mrf.mxu0
      %1325 = vdwg.mxu0
      %1326 = vmatprep.subr.bf16.mxu0 0
      %1327 = vmatpush1.bf16.msra.mxu0 %v767
      %1328 = vmatprep.subr.bf16.mxu0 0
      %1329 = vmatpush1.bf16.msra.mxu0 %v766
      %1330 = vmatprep.subr.bf16.mxu0 0
      %1331 = vmatpush1.bf16.msra.mxu0 %v765
      %1332 = vmatprep.subr.bf16.mxu0 0
      %1333 = vmatpush1.bf16.msra.mxu0 %v764
      %1334 = vmatprep.subr.bf16.mxu0 0
      %1335 = vmatpush1.bf16.msra.mxu0 %v763
      %1336 = vmatprep.subr.bf16.mxu0 0
      %1337 = vmatpush1.bf16.msra.mxu0 %v762
      %1338 = vmatprep.subr.bf16.mxu0 0
      %1339 = vmatpush1.bf16.msra.mxu0 %v761
      %1340 = vmatprep.subr.bf16.mxu0 0
      %1341 = vmatpush1.bf16.msra.mxu0 %v760
      %1342 = vmatprep.subr.bf16.mxu0 0
      %1343 = vmatpush2.bf16.msra.mxu0 %v775
      %1344 = vmatprep.subr.bf16.mxu0 0
      %1345 = vmatpush2.bf16.msra.mxu0 %v774
      %1346 = vmatprep.subr.bf16.mxu0 0
      %1347 = vmatpush2.bf16.msra.mxu0 %v773
      %1348 = vmatprep.subr.bf16.mxu0 0
      %1349 = vmatpush2.bf16.msra.mxu0 %v772
      %1350 = vmatprep.subr.bf16.mxu0 0
      %1351 = vmatpush2.bf16.msra.mxu0 %v771
      %1352 = vmatprep.subr.bf16.mxu0 0
      %1353 = vmatpush2.bf16.msra.mxu0 %v770
      %1354 = vmatprep.subr.bf16.mxu0 0
      %1355 = vmatpush2.bf16.msra.mxu0 %v769
      %1356 = vmatprep.subr.bf16.mxu0 0
      %1357 = vmatpush2.bf16.msra.mxu0 %v768
      %1358 = vmatprep.mubr.bf16.mxu0 %v1026
      %1359 = vmatmul.mubr.bf16.gmra.mxu0 %v1024
      %v1360 = vpop.f32.mrf.mxu0
      %v1361 = vadd.f32 %v1321, %v1360
      %v1362 = vpop.f32.mrf.mxu0
      %v1363 = vpop.f32.mrf.mxu0
      %v1364 = vpop.f32.mrf.mxu0
      %1365 = vdwg.mxu0
      %1366 = vmatprep.subr.bf16.mxu0 0
      %1367 = vmatpush1.bf16.msra.mxu0 %v783
      %1368 = vmatprep.subr.bf16.mxu0 0
      %1369 = vmatpush1.bf16.msra.mxu0 %v782
      %1370 = vmatprep.subr.bf16.mxu0 0
      %1371 = vmatpush1.bf16.msra.mxu0 %v781
      %1372 = vmatprep.subr.bf16.mxu0 0
      %1373 = vmatpush1.bf16.msra.mxu0 %v780
      %1374 = vmatprep.subr.bf16.mxu0 0
      %1375 = vmatpush1.bf16.msra.mxu0 %v779
      %1376 = vmatprep.subr.bf16.mxu0 0
      %1377 = vmatpush1.bf16.msra.mxu0 %v778
      %1378 = vmatprep.subr.bf16.mxu0 0
      %1379 = vmatpush1.bf16.msra.mxu0 %v777
      %1380 = vmatprep.subr.bf16.mxu0 0
      %1381 = vmatpush1.bf16.msra.mxu0 %v776
      %1382 = vmatprep.subr.bf16.mxu0 0
      %1383 = vmatpush2.bf16.msra.mxu0 %v791
      %1384 = vmatprep.subr.bf16.mxu0 0
      %1385 = vmatpush2.bf16.msra.mxu0 %v790
      %1386 = vmatprep.subr.bf16.mxu0 0
      %1387 = vmatpush2.bf16.msra.mxu0 %v789
      %1388 = vmatprep.subr.bf16.mxu0 0
      %1389 = vmatpush2.bf16.msra.mxu0 %v788
      %1390 = vmatprep.subr.bf16.mxu0 0
      %1391 = vmatpush2.bf16.msra.mxu0 %v787
      %1392 = vmatprep.subr.bf16.mxu0 0
      %1393 = vmatpush2.bf16.msra.mxu0 %v786
      %1394 = vmatprep.subr.bf16.mxu0 0
      %1395 = vmatpush2.bf16.msra.mxu0 %v785
      %1396 = vmatprep.subr.bf16.mxu0 0
      %1397 = vmatpush2.bf16.msra.mxu0 %v784
      %1398 = vmatprep.mubr.bf16.mxu0 %v1064
      %1399 = vmatmul.mubr.bf16.gmra.mxu0 %v1050
      %v1400 = vpop.f32.mrf.mxu0
      %v1401 = vadd.f32 %v1361, %v1400
      %v1402 = vpop.f32.mrf.mxu0
      %v1403 = vpop.f32.mrf.mxu0
      %v1404 = vpop.f32.mrf.mxu0
      %1405 = vdwg.mxu0
      %1406 = vmatprep.subr.bf16.mxu0 0
      %1407 = vmatpush1.bf16.msra.mxu0 %v799
      %1408 = vmatprep.subr.bf16.mxu0 0
      %1409 = vmatpush1.bf16.msra.mxu0 %v798
      %1410 = vmatprep.subr.bf16.mxu0 0
      %1411 = vmatpush1.bf16.msra.mxu0 %v797
      %1412 = vmatprep.subr.bf16.mxu0 0
      %1413 = vmatpush1.bf16.msra.mxu0 %v796
      %1414 = vmatprep.subr.bf16.mxu0 0
      %1415 = vmatpush1.bf16.msra.mxu0 %v795
      %1416 = vmatprep.subr.bf16.mxu0 0
      %1417 = vmatpush1.bf16.msra.mxu0 %v794
      %1418 = vmatprep.subr.bf16.mxu0 0
      %1419 = vmatpush1.bf16.msra.mxu0 %v793
      %1420 = vmatprep.subr.bf16.mxu0 0
      %1421 = vmatpush1.bf16.msra.mxu0 %v792
      %1422 = vmatprep.subr.bf16.mxu0 0
      %1423 = vmatpush2.bf16.msra.mxu0 %v807
      %1424 = vmatprep.subr.bf16.mxu0 0
      %1425 = vmatpush2.bf16.msra.mxu0 %v806
      %1426 = vmatprep.subr.bf16.mxu0 0
      %1427 = vmatpush2.bf16.msra.mxu0 %v805
      %1428 = vmatprep.subr.bf16.mxu0 0
      %1429 = vmatpush2.bf16.msra.mxu0 %v804
      %1430 = vmatprep.subr.bf16.mxu0 0
      %1431 = vmatpush2.bf16.msra.mxu0 %v803
      %1432 = vmatprep.subr.bf16.mxu0 0
      %1433 = vmatpush2.bf16.msra.mxu0 %v802
      %1434 = vmatprep.subr.bf16.mxu0 0
      %1435 = vmatpush2.bf16.msra.mxu0 %v801
      %1436 = vmatprep.subr.bf16.mxu0 0
      %1437 = vmatpush2.bf16.msra.mxu0 %v800
      %1438 = vmatprep.mubr.bf16.mxu0 %v1074
      %1439 = vmatmul.mubr.bf16.gmra.mxu0 %v1072
      %v1440 = vpop.f32.mrf.mxu0
      %v1441 = vadd.f32 %v1401, %v1440
      %v1442 = vpop.f32.mrf.mxu0
      %v1443 = vpop.f32.mrf.mxu0
      %v1444 = vpop.f32.mrf.mxu0
      %1445 = vdwg.mxu0
      %1446 = vmatprep.subr.bf16.mxu0 0
      %1447 = vmatpush1.bf16.msra.mxu0 %v815
      %1448 = vmatprep.subr.bf16.mxu0 0
      %1449 = vmatpush1.bf16.msra.mxu0 %v814
      %1450 = vmatprep.subr.bf16.mxu0 0
      %1451 = vmatpush1.bf16.msra.mxu0 %v813
      %1452 = vmatprep.subr.bf16.mxu0 0
      %1453 = vmatpush1.bf16.msra.mxu0 %v812
      %1454 = vmatprep.subr.bf16.mxu0 0
      %1455 = vmatpush1.bf16.msra.mxu0 %v811
      %1456 = vmatprep.subr.bf16.mxu0 0
      %1457 = vmatpush1.bf16.msra.mxu0 %v810
      %1458 = vmatprep.subr.bf16.mxu0 0
      %1459 = vmatpush1.bf16.msra.mxu0 %v809
      %1460 = vmatprep.subr.bf16.mxu0 0
      %1461 = vmatpush1.bf16.msra.mxu0 %v808
      %1462 = vmatprep.subr.bf16.mxu0 0
      %1463 = vmatpush2.bf16.msra.mxu0 %v823
      %1464 = vmatprep.subr.bf16.mxu0 0
      %1465 = vmatpush2.bf16.msra.mxu0 %v822
      %1466 = vmatprep.subr.bf16.mxu0 0
      %1467 = vmatpush2.bf16.msra.mxu0 %v821
      %1468 = vmatprep.subr.bf16.mxu0 0
      %1469 = vmatpush2.bf16.msra.mxu0 %v820
      %1470 = vmatprep.subr.bf16.mxu0 0
      %1471 = vmatpush2.bf16.msra.mxu0 %v819
      %1472 = vmatprep.subr.bf16.mxu0 0
      %1473 = vmatpush2.bf16.msra.mxu0 %v818
      %1474 = vmatprep.subr.bf16.mxu0 0
      %1475 = vmatpush2.bf16.msra.mxu0 %v817
      %1476 = vmatprep.subr.bf16.mxu0 0
      %1477 = vmatpush2.bf16.msra.mxu0 %v816
      %1478 = vmatprep.mubr.bf16.mxu0 %v1071
      %1479 = vmatmul.mubr.bf16.gmra.mxu0 %v1057
      %v1480 = vpop.f32.mrf.mxu0
      %v1481 = vadd.f32 %v1441, %v1480
      %v1482 = vpop.f32.mrf.mxu0
      %v1483 = vpop.f32.mrf.mxu0
      %v1484 = vpop.f32.mrf.mxu0
      %1485 = vdwg.mxu0
      %1486 = vmatprep.subr.bf16.mxu0 0
      %1487 = vmatpush1.bf16.msra.mxu0 %v831
      %1488 = vmatprep.subr.bf16.mxu0 0
      %1489 = vmatpush1.bf16.msra.mxu0 %v830
      %1490 = vmatprep.subr.bf16.mxu0 0
      %1491 = vmatpush1.bf16.msra.mxu0 %v829
      %1492 = vmatprep.subr.bf16.mxu0 0
      %1493 = vmatpush1.bf16.msra.mxu0 %v828
      %1494 = vmatprep.subr.bf16.mxu0 0
      %1495 = vmatpush1.bf16.msra.mxu0 %v827
      %1496 = vmatprep.subr.bf16.mxu0 0
      %1497 = vmatpush1.bf16.msra.mxu0 %v826
      %1498 = vmatprep.subr.bf16.mxu0 0
      %1499 = vmatpush1.bf16.msra.mxu0 %v825
      %1500 = vmatprep.subr.bf16.mxu0 0
      %1501 = vmatpush1.bf16.msra.mxu0 %v824
      %1502 = vmatprep.subr.bf16.mxu0 0
      %1503 = vmatpush2.bf16.msra.mxu0 %v839
      %1504 = vmatprep.subr.bf16.mxu0 0
      %1505 = vmatpush2.bf16.msra.mxu0 %v838
      %1506 = vmatprep.subr.bf16.mxu0 0
      %1507 = vmatpush2.bf16.msra.mxu0 %v837
      %1508 = vmatprep.subr.bf16.mxu0 0
      %1509 = vmatpush2.bf16.msra.mxu0 %v836
      %1510 = vmatprep.subr.bf16.mxu0 0
      %1511 = vmatpush2.bf16.msra.mxu0 %v835
      %1512 = vmatprep.subr.bf16.mxu0 0
      %1513 = vmatpush2.bf16.msra.mxu0 %v834
      %1514 = vmatprep.subr.bf16.mxu0 0
      %1515 = vmatpush2.bf16.msra.mxu0 %v833
      %1516 = vmatprep.subr.bf16.mxu0 0
      %1517 = vmatpush2.bf16.msra.mxu0 %v832
      %1518 = vmatprep.mubr.bf16.mxu0 %v1075
      %1519 = vmatmul.mubr.bf16.gmra.mxu0 %v1073
      %v1520 = vpop.f32.mrf.mxu0
      %v1521 = vadd.f32 %v1481, %v1520
      %v1522 = vpop.f32.mrf.mxu0
      %v1523 = vpop.f32.mrf.mxu0
      %v1524 = vpop.f32.mrf.mxu0
      %1525 = vdwg.mxu0
      %1526 = vmatprep.subr.bf16.mxu0 0
      %1527 = vmatpush1.bf16.msra.mxu0 %v847
      %1528 = vmatprep.subr.bf16.mxu0 0
      %1529 = vmatpush1.bf16.msra.mxu0 %v846
      %1530 = vmatprep.subr.bf16.mxu0 0
      %1531 = vmatpush1.bf16.msra.mxu0 %v845
      %1532 = vmatprep.subr.bf16.mxu0 0
      %1533 = vmatpush1.bf16.msra.mxu0 %v844
      %1534 = vmatprep.subr.bf16.mxu0 0
      %1535 = vmatpush1.bf16.msra.mxu0 %v843
      %1536 = vmatprep.subr.bf16.mxu0 0
      %1537 = vmatpush1.bf16.msra.mxu0 %v842
      %1538 = vmatprep.subr.bf16.mxu0 0
      %1539 = vmatpush1.bf16.msra.mxu0 %v841
      %1540 = vmatprep.subr.bf16.mxu0 0
      %1541 = vmatpush1.bf16.msra.mxu0 %v840
      %1542 = vmatprep.subr.bf16.mxu0 0
      %1543 = vmatpush2.bf16.msra.mxu0 %v855
      %1544 = vmatprep.subr.bf16.mxu0 0
      %1545 = vmatpush2.bf16.msra.mxu0 %v854
      %1546 = vmatprep.subr.bf16.mxu0 0
      %1547 = vmatpush2.bf16.msra.mxu0 %v853
      %1548 = vmatprep.subr.bf16.mxu0 0
      %1549 = vmatpush2.bf16.msra.mxu0 %v852
      %1550 = vmatprep.subr.bf16.mxu0 0
      %1551 = vmatpush2.bf16.msra.mxu0 %v851
      %1552 = vmatprep.subr.bf16.mxu0 0
      %1553 = vmatpush2.bf16.msra.mxu0 %v850
      %1554 = vmatprep.subr.bf16.mxu0 0
      %1555 = vmatpush2.bf16.msra.mxu0 %v849
      %1556 = vmatprep.subr.bf16.mxu0 0
      %1557 = vmatpush2.bf16.msra.mxu0 %v848
      %1558 = vmatprep.mubr.bf16.mxu0 %v1113
      %1559 = vmatmul.mubr.bf16.gmra.mxu0 %v1099
      %v1560 = vpop.f32.mrf.mxu0
      %v1561 = vadd.f32 %v1521, %v1560
      %v1562 = vpop.f32.mrf.mxu0
      %v1563 = vpop.f32.mrf.mxu0
      %v1564 = vpop.f32.mrf.mxu0
      %1565 = vdwg.mxu0
      %1566 = vmatprep.subr.bf16.mxu0 0
      %1567 = vmatpush1.bf16.msra.mxu0 %v863
      %1568 = vmatprep.subr.bf16.mxu0 0
      %1569 = vmatpush1.bf16.msra.mxu0 %v862
      %1570 = vmatprep.subr.bf16.mxu0 0
      %1571 = vmatpush1.bf16.msra.mxu0 %v861
      %1572 = vmatprep.subr.bf16.mxu0 0
      %1573 = vmatpush1.bf16.msra.mxu0 %v860
      %1574 = vmatprep.subr.bf16.mxu0 0
      %1575 = vmatpush1.bf16.msra.mxu0 %v859
      %1576 = vmatprep.subr.bf16.mxu0 0
      %1577 = vmatpush1.bf16.msra.mxu0 %v858
      %1578 = vmatprep.subr.bf16.mxu0 0
      %1579 = vmatpush1.bf16.msra.mxu0 %v857
      %1580 = vmatprep.subr.bf16.mxu0 0
      %1581 = vmatpush1.bf16.msra.mxu0 %v856
      %1582 = vmatprep.subr.bf16.mxu0 0
      %1583 = vmatpush2.bf16.msra.mxu0 %v871
      %1584 = vmatprep.subr.bf16.mxu0 0
      %1585 = vmatpush2.bf16.msra.mxu0 %v870
      %1586 = vmatprep.subr.bf16.mxu0 0
      %1587 = vmatpush2.bf16.msra.mxu0 %v869
      %1588 = vmatprep.subr.bf16.mxu0 0
      %1589 = vmatpush2.bf16.msra.mxu0 %v868
      %1590 = vmatprep.subr.bf16.mxu0 0
      %1591 = vmatpush2.bf16.msra.mxu0 %v867
      %1592 = vmatprep.subr.bf16.mxu0 0
      %1593 = vmatpush2.bf16.msra.mxu0 %v866
      %1594 = vmatprep.subr.bf16.mxu0 0
      %1595 = vmatpush2.bf16.msra.mxu0 %v865
      %1596 = vmatprep.subr.bf16.mxu0 0
      %1597 = vmatpush2.bf16.msra.mxu0 %v864
      %1598 = vmatprep.mubr.bf16.mxu0 %v1123
      %1599 = vmatmul.mubr.bf16.gmra.mxu0 %v1121
      %v1600 = vpop.f32.mrf.mxu0
      %v1601 = vadd.f32 %v1561, %v1600
      %v1602 = vpop.f32.mrf.mxu0
      %v1603 = vpop.f32.mrf.mxu0
      %v1604 = vpop.f32.mrf.mxu0
      %1605 = vdwg.mxu0
      %1606 = vmatprep.subr.bf16.mxu0 0
      %1607 = vmatpush1.bf16.msra.mxu0 %v879
      %1608 = vmatprep.subr.bf16.mxu0 0
      %1609 = vmatpush1.bf16.msra.mxu0 %v878
      %1610 = vmatprep.subr.bf16.mxu0 0
      %1611 = vmatpush1.bf16.msra.mxu0 %v877
      %1612 = vmatprep.subr.bf16.mxu0 0
      %1613 = vmatpush1.bf16.msra.mxu0 %v876
      %1614 = vmatprep.subr.bf16.mxu0 0
      %1615 = vmatpush1.bf16.msra.mxu0 %v875
      %1616 = vmatprep.subr.bf16.mxu0 0
      %1617 = vmatpush1.bf16.msra.mxu0 %v874
      %1618 = vmatprep.subr.bf16.mxu0 0
      %1619 = vmatpush1.bf16.msra.mxu0 %v873
      %1620 = vmatprep.subr.bf16.mxu0 0
      %1621 = vmatpush1.bf16.msra.mxu0 %v872
      %1622 = vmatprep.subr.bf16.mxu0 0
      %1623 = vmatpush2.bf16.msra.mxu0 %v887
      %1624 = vmatprep.subr.bf16.mxu0 0
      %1625 = vmatpush2.bf16.msra.mxu0 %v886
      %1626 = vmatprep.subr.bf16.mxu0 0
      %1627 = vmatpush2.bf16.msra.mxu0 %v885
      %1628 = vmatprep.subr.bf16.mxu0 0
      %1629 = vmatpush2.bf16.msra.mxu0 %v884
      %1630 = vmatprep.subr.bf16.mxu0 0
      %1631 = vmatpush2.bf16.msra.mxu0 %v883
      %1632 = vmatprep.subr.bf16.mxu0 0
      %1633 = vmatpush2.bf16.msra.mxu0 %v882
      %1634 = vmatprep.subr.bf16.mxu0 0
      %1635 = vmatpush2.bf16.msra.mxu0 %v881
      %1636 = vmatprep.subr.bf16.mxu0 0
      %1637 = vmatpush2.bf16.msra.mxu0 %v880
      %1638 = vmatprep.mubr.bf16.mxu0 %v1120
      %1639 = vmatmul.mubr.bf16.gmra.mxu0 %v1106
      %v1640 = vpop.f32.mrf.mxu0
      %v1641 = vadd.f32 %v1601, %v1640
      %v1642 = vpop.f32.mrf.mxu0
      %v1643 = vpop.f32.mrf.mxu0
      %v1644 = vpop.f32.mrf.mxu0
      %1645 = vdwg.mxu0
      %1646 = vmatprep.subr.bf16.mxu0 0
      %1647 = vmatpush1.bf16.msra.mxu0 %v895
      %1648 = vmatprep.subr.bf16.mxu0 0
      %1649 = vmatpush1.bf16.msra.mxu0 %v894
      %1650 = vmatprep.subr.bf16.mxu0 0
      %1651 = vmatpush1.bf16.msra.mxu0 %v893
      %1652 = vmatprep.subr.bf16.mxu0 0
      %1653 = vmatpush1.bf16.msra.mxu0 %v892
      %1654 = vmatprep.subr.bf16.mxu0 0
      %1655 = vmatpush1.bf16.msra.mxu0 %v891
      %1656 = vmatprep.subr.bf16.mxu0 0
      %1657 = vmatpush1.bf16.msra.mxu0 %v890
      %1658 = vmatprep.subr.bf16.mxu0 0
      %1659 = vmatpush1.bf16.msra.mxu0 %v889
      %1660 = vmatprep.subr.bf16.mxu0 0
      %1661 = vmatpush1.bf16.msra.mxu0 %v888
      %1662 = vmatprep.subr.bf16.mxu0 0
      %1663 = vmatpush2.bf16.msra.mxu0 %v903
      %1664 = vmatprep.subr.bf16.mxu0 0
      %1665 = vmatpush2.bf16.msra.mxu0 %v902
      %1666 = vmatprep.subr.bf16.mxu0 0
      %1667 = vmatpush2.bf16.msra.mxu0 %v901
      %1668 = vmatprep.subr.bf16.mxu0 0
      %1669 = vmatpush2.bf16.msra.mxu0 %v900
      %1670 = vmatprep.subr.bf16.mxu0 0
      %1671 = vmatpush2.bf16.msra.mxu0 %v899
      %1672 = vmatprep.subr.bf16.mxu0 0
      %1673 = vmatpush2.bf16.msra.mxu0 %v898
      %1674 = vmatprep.subr.bf16.mxu0 0
      %1675 = vmatpush2.bf16.msra.mxu0 %v897
      %1676 = vmatprep.subr.bf16.mxu0 0
      %1677 = vmatpush2.bf16.msra.mxu0 %v896
      %1678 = vmatprep.mubr.bf16.mxu0 %v1124
      %1679 = vmatmul.mubr.bf16.gmra.mxu0 %v1122
      %v1680 = vpop.f32.mrf.mxu0
      %v1681 = vadd.f32 %v1641, %v1680
      %v1682 = vpop.f32.mrf.mxu0
      %v1683 = vpop.f32.mrf.mxu0
      %v1684 = vpop.f32.mrf.mxu0
      %1685 = vdwg.mxu0
      %1686 = vmatprep.subr.bf16.mxu0 0
      %1687 = vmatpush1.bf16.msra.mxu0 %v911
      %1688 = vmatprep.subr.bf16.mxu0 0
      %1689 = vmatpush1.bf16.msra.mxu0 %v910
      %1690 = vmatprep.subr.bf16.mxu0 0
      %1691 = vmatpush1.bf16.msra.mxu0 %v909
      %1692 = vmatprep.subr.bf16.mxu0 0
      %1693 = vmatpush1.bf16.msra.mxu0 %v908
      %1694 = vmatprep.subr.bf16.mxu0 0
      %1695 = vmatpush1.bf16.msra.mxu0 %v907
      %1696 = vmatprep.subr.bf16.mxu0 0
      %1697 = vmatpush1.bf16.msra.mxu0 %v906
      %1698 = vmatprep.subr.bf16.mxu0 0
      %1699 = vmatpush1.bf16.msra.mxu0 %v905
      %1700 = vmatprep.subr.bf16.mxu0 0
      %1701 = vmatpush1.bf16.msra.mxu0 %v904
      %1702 = vmatprep.subr.bf16.mxu0 0
      %1703 = vmatpush2.bf16.msra.mxu0 %v919
      %1704 = vmatprep.subr.bf16.mxu0 0
      %1705 = vmatpush2.bf16.msra.mxu0 %v918
      %1706 = vmatprep.subr.bf16.mxu0 0
      %1707 = vmatpush2.bf16.msra.mxu0 %v917
      %1708 = vmatprep.subr.bf16.mxu0 0
      %1709 = vmatpush2.bf16.msra.mxu0 %v916
      %1710 = vmatprep.subr.bf16.mxu0 0
      %1711 = vmatpush2.bf16.msra.mxu0 %v915
      %1712 = vmatprep.subr.bf16.mxu0 0
      %1713 = vmatpush2.bf16.msra.mxu0 %v914
      %1714 = vmatprep.subr.bf16.mxu0 0
      %1715 = vmatpush2.bf16.msra.mxu0 %v913
      %1716 = vmatprep.subr.bf16.mxu0 0
      %1717 = vmatpush2.bf16.msra.mxu0 %v912
      %1718 = vmatprep.mubr.bf16.mxu0 %v1162
      %1719 = vmatmul.mubr.bf16.gmra.mxu0 %v1148
      %v1720 = vpop.f32.mrf.mxu0
      %v1721 = vadd.f32 %v1681, %v1720
      %v1722 = vpop.f32.mrf.mxu0
      %v1723 = vpop.f32.mrf.mxu0
      %v1724 = vpop.f32.mrf.mxu0
      %1725 = vdwg.mxu0
      %1726 = vmatprep.subr.bf16.mxu0 0
      %1727 = vmatpush1.bf16.msra.mxu0 %v927
      %1728 = vmatprep.subr.bf16.mxu0 0
      %1729 = vmatpush1.bf16.msra.mxu0 %v926
      %1730 = vmatprep.subr.bf16.mxu0 0
      %1731 = vmatpush1.bf16.msra.mxu0 %v925
      %1732 = vmatprep.subr.bf16.mxu0 0
      %1733 = vmatpush1.bf16.msra.mxu0 %v924
      %1734 = vmatprep.subr.bf16.mxu0 0
      %1735 = vmatpush1.bf16.msra.mxu0 %v923
      %1736 = vmatprep.subr.bf16.mxu0 0
      %1737 = vmatpush1.bf16.msra.mxu0 %v922
      %1738 = vmatprep.subr.bf16.mxu0 0
      %1739 = vmatpush1.bf16.msra.mxu0 %v921
      %1740 = vmatprep.subr.bf16.mxu0 0
      %1741 = vmatpush1.bf16.msra.mxu0 %v920
      %1742 = vmatprep.subr.bf16.mxu0 0
      %1743 = vmatpush2.bf16.msra.mxu0 %v935
      %1744 = vmatprep.subr.bf16.mxu0 0
      %1745 = vmatpush2.bf16.msra.mxu0 %v934
      %1746 = vmatprep.subr.bf16.mxu0 0
      %1747 = vmatpush2.bf16.msra.mxu0 %v933
      %1748 = vmatprep.subr.bf16.mxu0 0
      %1749 = vmatpush2.bf16.msra.mxu0 %v932
      %1750 = vmatprep.subr.bf16.mxu0 0
      %1751 = vmatpush2.bf16.msra.mxu0 %v931
      %1752 = vmatprep.subr.bf16.mxu0 0
      %1753 = vmatpush2.bf16.msra.mxu0 %v930
      %1754 = vmatprep.subr.bf16.mxu0 0
      %1755 = vmatpush2.bf16.msra.mxu0 %v929
      %1756 = vmatprep.subr.bf16.mxu0 0
      %1757 = vmatpush2.bf16.msra.mxu0 %v928
      %1758 = vmatprep.mubr.bf16.mxu0 %v1172
      %1759 = vmatmul.mubr.bf16.gmra.mxu0 %v1170
      %v1760 = vpop.f32.mrf.mxu0
      %v1761 = vadd.f32 %v1721, %v1760
      %v1762 = vpop.f32.mrf.mxu0
      %v1763 = vpop.f32.mrf.mxu0
      %v1764 = vpop.f32.mrf.mxu0
      %1765 = vdwg.mxu0
      %1766 = vmatprep.subr.bf16.mxu0 0
      %1767 = vmatpush1.bf16.msra.mxu0 %v943
      %1768 = vmatprep.subr.bf16.mxu0 0
      %1769 = vmatpush1.bf16.msra.mxu0 %v942
      %1770 = vmatprep.subr.bf16.mxu0 0
      %1771 = vmatpush1.bf16.msra.mxu0 %v941
      %1772 = vmatprep.subr.bf16.mxu0 0
      %1773 = vmatpush1.bf16.msra.mxu0 %v940
      %1774 = vmatprep.subr.bf16.mxu0 0
      %1775 = vmatpush1.bf16.msra.mxu0 %v939
      %1776 = vmatprep.subr.bf16.mxu0 0
      %1777 = vmatpush1.bf16.msra.mxu0 %v938
      %1778 = vmatprep.subr.bf16.mxu0 0
      %1779 = vmatpush1.bf16.msra.mxu0 %v937
      %1780 = vmatprep.subr.bf16.mxu0 0
      %1781 = vmatpush1.bf16.msra.mxu0 %v936
      %1782 = vmatprep.subr.bf16.mxu0 0
      %1783 = vmatpush2.bf16.msra.mxu0 %v951
      %1784 = vmatprep.subr.bf16.mxu0 0
      %1785 = vmatpush2.bf16.msra.mxu0 %v950
      %1786 = vmatprep.subr.bf16.mxu0 0
      %1787 = vmatpush2.bf16.msra.mxu0 %v949
      %1788 = vmatprep.subr.bf16.mxu0 0
      %1789 = vmatpush2.bf16.msra.mxu0 %v948
      %1790 = vmatprep.subr.bf16.mxu0 0
      %1791 = vmatpush2.bf16.msra.mxu0 %v947
      %1792 = vmatprep.subr.bf16.mxu0 0
      %1793 = vmatpush2.bf16.msra.mxu0 %v946
      %1794 = vmatprep.subr.bf16.mxu0 0
      %1795 = vmatpush2.bf16.msra.mxu0 %v945
      %1796 = vmatprep.subr.bf16.mxu0 0
      %1797 = vmatpush2.bf16.msra.mxu0 %v944
      %1798 = vmatprep.mubr.bf16.mxu0 %v1169
      %1799 = vmatmul.mubr.bf16.gmra.mxu0 %v1155
      %v1800 = vpop.f32.mrf.mxu0
      %v1801 = vadd.f32 %v1761, %v1800
      %v1802 = vpop.f32.mrf.mxu0
      %v1803 = vpop.f32.mrf.mxu0
      %v1804 = vpop.f32.mrf.mxu0
      %1805 = vdwg.mxu0
      %1806 = vmatprep.subr.bf16.mxu0 0
      %1807 = vmatpush1.bf16.msra.mxu0 %v959
      %1808 = vmatprep.subr.bf16.mxu0 0
      %1809 = vmatpush1.bf16.msra.mxu0 %v958
      %1810 = vmatprep.subr.bf16.mxu0 0
      %1811 = vmatpush1.bf16.msra.mxu0 %v957
      %1812 = vmatprep.subr.bf16.mxu0 0
      %1813 = vmatpush1.bf16.msra.mxu0 %v956
      %1814 = vmatprep.subr.bf16.mxu0 0
      %1815 = vmatpush1.bf16.msra.mxu0 %v955
      %1816 = vmatprep.subr.bf16.mxu0 0
      %1817 = vmatpush1.bf16.msra.mxu0 %v954
      %1818 = vmatprep.subr.bf16.mxu0 0
      %1819 = vmatpush1.bf16.msra.mxu0 %v953
      %1820 = vmatprep.subr.bf16.mxu0 0
      %1821 = vmatpush1.bf16.msra.mxu0 %v952
      %1822 = vmatprep.subr.bf16.mxu0 0
      %1823 = vmatpush2.bf16.msra.mxu0 %v967
      %1824 = vmatprep.subr.bf16.mxu0 0
      %1825 = vmatpush2.bf16.msra.mxu0 %v966
      %1826 = vmatprep.subr.bf16.mxu0 0
      %1827 = vmatpush2.bf16.msra.mxu0 %v965
      %1828 = vmatprep.subr.bf16.mxu0 0
      %1829 = vmatpush2.bf16.msra.mxu0 %v964
      %1830 = vmatprep.subr.bf16.mxu0 0
      %1831 = vmatpush2.bf16.msra.mxu0 %v963
      %1832 = vmatprep.subr.bf16.mxu0 0
      %1833 = vmatpush2.bf16.msra.mxu0 %v962
      %1834 = vmatprep.subr.bf16.mxu0 0
      %1835 = vmatpush2.bf16.msra.mxu0 %v961
      %1836 = vmatprep.subr.bf16.mxu0 0
      %1837 = vmatpush2.bf16.msra.mxu0 %v960
      %1838 = vmatprep.mubr.bf16.mxu0 %v1173
      %1839 = vmatmul.mubr.bf16.gmra.mxu0 %v1171
      %v1840 = vpop.f32.mrf.mxu0
      %v1841 = vadd.f32 %v1801, %v1840
      %v1842 = vpop.f32.mrf.mxu0
      %v1843 = vpop.f32.mrf.mxu0
      %v1844 = vpop.f32.mrf.mxu0
      %1845 = vdwg.mxu0
      %v1846 = vxor.u32 %v1841, 2147483648
      %v1847 = vmul.f32 %v1846, 1.442695
      %v1848 = vpow.pop %v1847
      %v1849 = vadd.f32 %v1848, 1.0
      %v1850 = vrcp.pop %v1849
      %v1851 = vmul.f32 1.0, %v1850
      %1852 = vst [vmem:[%s198] sm:$0x1] %v1851
      %p1853 = scmp.lt.s32.totalorder %s19, 1
      %s1854 = scalar_select %p1853, %s19, 1
      %p1855 = scmp.lt.s32.totalorder %s20, 0
      %s1856 = scalar_select %p1855, %s20, 0
      %s1857 = sadd.s32 %s1856, %s1854
      %s1858 = scalar_lea.vmem %s3, %s1857
      // Predicated region
      $region33: #{netD_forward.1} parent=31 // pred_check
        %p1859 = pneg %p117
      $region34: #{netD_forward.1} parent=31 // pred_check_branch
        %1861 = sbr.rel (%p1859) target = $region36
      $region35: #{netD_forward.1} parent=31 // pred_region
        _
      $region36: #{netD_forward.1} parent=31 // pred_fallthru
        _
    $region32: #{netD_forward.1} parent=5 // pred_fallthru
      _
    %p1862 = scmp.le.s32.totalorder 2, %s10
    // Predicated region
    $region37: #{netD_forward.1} parent=5 // pred_check
      %p1863 = pneg %p1862
    $region38: #{netD_forward.1} parent=5 // pred_check_branch
      %1865 = sbr.rel (%p1863) target = $region40
    $region39: #{netD_forward.1} parent=5 // pred_region
      %s1866 = ssub.s32 %s10, 2
      // Predicated region
      $region41: #{netD_forward.1} parent=39 // pred_check
        %p1867 = pneg %p123
      $region42: #{netD_forward.1} parent=39 // pred_check_branch
        %1869 = sbr.rel (%p1867) target = $region44
      $region43: #{netD_forward.1} parent=39 // pred_region
        %p1870 = scmp.lt.s32.totalorder %s21, 1
        %s1871 = scalar_select %p1870, %s21, 1
        %p1872 = scmp.lt.s32.totalorder %s22, 0
        %s1873 = scalar_select %p1872, %s22, 0
        %s1874 = sadd.s32 %s1873, %s1871
        %s1875 = scalar_lea.vmem %s3, %s1874
      $region44: #{netD_forward.1} parent=39 // pred_fallthru
        _
    $region40: #{netD_forward.1} parent=5 // pred_fallthru
      _
  $region6: #{netD_forward.1} parent=0 // loop_footer
    %s14 = sadd.s32 1, %s10
  $region7: #{netD_forward.1} parent=0 // loop_footer_branch
    %9 = sbr.rel target = $region3
  $region8: #{netD_forward.1} parent=0 // loop_exit
    _

</llo_original>
